<compile_context>
chip_gen: v7x
topology: tpu7x:2x2x1
jax: 0.10.0
libtpu: 0.0.40
codegen_flags: <defaults>
</compile_context>

<pallas_src>
import jax
import jax.numpy as jnp
from jax import lax
from jax.experimental import pallas as pl
from jax.experimental.pallas import tpu as pltpu


def _attn_kernel(q_ref, k_ref, mask_ref, rhs_ref, bias_ref, out_ref):
    # Whole arrays are VMEM-resident (no grid, no pipelining overhead).
    q = q_ref[...]        # [bsz, tgt, d]
    k = k_ref[...]        # [bsz, src, d]
    mask = mask_ref[...]  # [bsz, tgt, src]
    rhs = rhs_ref[...]    # [bsz, src, d + tgt]  = concat([v, W^T], axis=-1)
    bias = bias_ref[...]  # [1, 1, d + tgt]      = concat([zeros(d), b])

    # scores = q @ k^T + mask  (contracting dims feed the MXU directly; no XLU
    # transpose).  HIGHEST precision => full-precision multi-pass f32 MXU path.
    scores = jnp.einsum(
        "btd,bsd->bts", q, k,
        preferred_element_type=jnp.float32,
        precision=lax.Precision.HIGHEST,
    ) + mask

    # Numerically-stable softmax numerator; normalization deferred.
    m = jnp.max(scores, axis=-1, keepdims=True)
    e = jnp.exp(scores - m)                          # [bsz, tgt, src]
    denom = jnp.sum(e, axis=-1, keepdims=True)       # [bsz, tgt, 1]

    # EUP approx reciprocal + one Newton-Raphson step (error << 1e-4).
    inv = pl.reciprocal(denom, approx=True)
    inv = inv * (2.0 - denom * inv)

    # One fused MXU pass for both outputs: [ctx | proj_un] = e @ [v | W^T].
    fused = jnp.einsum(
        "bts,bsn->btn", e, rhs,
        preferred_element_type=jnp.float32,
        precision=lax.Precision.HIGHEST,
    )                                                # [bsz, tgt, d + tgt]

    # Single row-scale (deferred softmax denom) + zero-padded bias add.
    out_ref[...] = (fused * inv + bias).astype(out_ref.dtype)


def attention_with_linear(q, k, v, mask, w, b):
    bsz, tgt_len, d = q.shape
    src_len = k.shape[1]
    n_out = d + tgt_len

    # Host-side layout prep (pure plumbing, done once outside the kernel):
    #   * W pre-transposed to [src, tgt] so the kernel never transposes.
    #   * rhs = [v | W^T] broadcast over batch -> one fused GEMM RHS.
    #   * bias zero-padded over the ctx columns so one VPU madd covers both.
    wt = jnp.transpose(jnp.asarray(w, jnp.float32))                    # [src, tgt]
    rhs = jnp.concatenate(
        [v, jnp.broadcast_to(wt[None], (bsz, src_len, tgt_len))], axis=-1
    )                                                                   # [bsz, src, d+tgt]
    bias_full = jnp.concatenate(
        [jnp.zeros((d,), jnp.float32), jnp.asarray(b, jnp.float32)]
    ).reshape(1, 1, n_out)

    out_shape = jax.ShapeDtypeStruct((bsz, tgt_len, n_out), jnp.float32)

    # Explicit VMEM placement for every operand (full-array blocks, no grid).
    vmem_spec = pl.BlockSpec(memory_space=pltpu.MemorySpace.VMEM)

    flops = (2 * bsz * tgt_len * src_len * d            # q @ k^T
             + 2 * bsz * tgt_len * src_len * n_out      # fused [ctx | proj] GEMM
             + 6 * bsz * tgt_len * src_len)             # mask add + softmax elementwise
    transcendentals = bsz * tgt_len * src_len + bsz * tgt_len   # exp + reciprocal
    bytes_accessed = 4 * (q.size + k.size + mask.size + rhs.size
                          + bias_full.size + bsz * tgt_len * n_out)

    out = pl.pallas_call(
        _attn_kernel,
        out_shape=out_shape,
        in_specs=[vmem_spec, vmem_spec, vmem_spec, vmem_spec, vmem_spec],
        out_specs=vmem_spec,
        cost_estimate=pl.CostEstimate(
            flops=flops,
            transcendentals=transcendentals,
            bytes_accessed=bytes_accessed,
        ),
    )(q, k, mask, rhs, bias_full)

    # Wrapper-side split of the lane-dense slab (layout plumbing in XLA).
    ctx = out[..., :d]          # [bsz, tgt, d]
    proj = out[..., d:]         # [bsz, tgt, tgt]
    return ctx, proj


def _reference(q, k, v, mask, w, b):
    scores = jnp.einsum("btd,bsd->bts", q, k) + mask
    probs = jax.nn.softmax(scores, axis=-1)
    ctx = jnp.einsum("bts,bsd->btd", probs, v)
    proj = probs @ w.T + b
    return ctx, proj


if __name__ == "__main__":
    bsz, tgt_len, src_len, d = 2, 16, 32, 64

    key = jax.random.PRNGKey(0)
    kq, kk, kv, km, kw, kb = jax.random.split(key, 6)
    q = jax.random.normal(kq, (bsz, tgt_len, d), dtype=jnp.float32)
    k = jax.random.normal(kk, (bsz, src_len, d), dtype=jnp.float32)
    v = jax.random.normal(kv, (bsz, src_len, d), dtype=jnp.float32)
    mask = jax.random.normal(km, (bsz, tgt_len, src_len), dtype=jnp.float32)

    # Deterministic Linear(src_len, tgt_len) parameters.
    w = (jax.random.normal(kw, (tgt_len, src_len), dtype=jnp.float32)
         * (1.0 / jnp.sqrt(src_len)))
    b = jax.random.normal(kb, (tgt_len,), dtype=jnp.float32) * 0.1

    ctx, proj = attention_with_linear(q, k, v, mask, w, b)
    jax.block_until_ready((ctx, proj))

    ctx_ref, proj_ref = _reference(q, k, v, mask, w, b)
    assert jnp.allclose(ctx, ctx_ref, atol=1e-4, rtol=1e-4), "ctx mismatch"
    assert jnp.allclose(proj, proj_ref, atol=1e-4, rtol=1e-4), "proj mismatch"

    print("KERNEL_OK")
</pallas_src>

<mosaic_0001>
module attributes {stable_mosaic.version = 11 : i64} {
  func.func @_attn_kernel(%arg0: memref<2x16x64xf32, #tpu.memory_space<vmem>>, %arg1: memref<2x32x64xf32, #tpu.memory_space<vmem>>, %arg2: memref<2x16x32xf32, #tpu.memory_space<vmem>>, %arg3: memref<2x32x80xf32, #tpu.memory_space<vmem>>, %arg4: memref<1x1x80xf32, #tpu.memory_space<vmem>>, %arg5: memref<2x16x80xf32, #tpu.memory_space<vmem>>) attributes {dimension_semantics = [], scalar_prefetch = 0 : i64, scratch_operands = 0 : i64, tpu.core_type = #tpu.core_type<tc>} {
    %c0 = arith.constant 0 : index
    %c0_0 = arith.constant 0 : index
    %c0_1 = arith.constant 0 : index
    %0 = vector.load %arg0[%c0, %c0_0, %c0_1] : memref<2x16x64xf32, #tpu.memory_space<vmem>>, vector<2x16x64xf32>
    %c0_2 = arith.constant 0 : index
    %c0_3 = arith.constant 0 : index
    %c0_4 = arith.constant 0 : index
    %1 = vector.load %arg1[%c0_2, %c0_3, %c0_4] : memref<2x32x64xf32, #tpu.memory_space<vmem>>, vector<2x32x64xf32>
    %c0_5 = arith.constant 0 : index
    %c0_6 = arith.constant 0 : index
    %c0_7 = arith.constant 0 : index
    %2 = vector.load %arg2[%c0_5, %c0_6, %c0_7] : memref<2x16x32xf32, #tpu.memory_space<vmem>>, vector<2x16x32xf32>
    %c0_8 = arith.constant 0 : index
    %c0_9 = arith.constant 0 : index
    %c0_10 = arith.constant 0 : index
    %3 = vector.load %arg3[%c0_8, %c0_9, %c0_10] : memref<2x32x80xf32, #tpu.memory_space<vmem>>, vector<2x32x80xf32>
    %c0_11 = arith.constant 0 : index
    %c0_12 = arith.constant 0 : index
    %c0_13 = arith.constant 0 : index
    %4 = vector.load %arg4[%c0_11, %c0_12, %c0_13] : memref<1x1x80xf32, #tpu.memory_space<vmem>>, vector<1x1x80xf32>
    "tpu.trace_start"() <{level = 10 : i32, message = "btd,bsd->bts"}> : () -> ()
    %cst = arith.constant dense<0.000000e+00> : vector<2x16x32xf32>
    %5 = tpu.matmul %0, %1, %cst {dimension_numbers = #tpu.dot_dimension_numbers<[2], [2], [1], [1], [0, 0, 0, 1, 1, 1], [0], [0]>, precision = #tpu.contract_precision<fp32>} : vector<2x16x64xf32>, vector<2x32x64xf32>, vector<2x16x32xf32> -> vector<2x16x32xf32>
    "tpu.trace_stop"() : () -> ()
    %6 = arith.addf %5, %2 : vector<2x16x32xf32>
    %cst_14 = arith.constant dense<0xFF800000> : vector<2x16xf32>
    %7 = vector.multi_reduction <maximumf>, %6, %cst_14 [2] : vector<2x16x32xf32> to vector<2x16xf32>
    %8 = vector.shape_cast %7 : vector<2x16xf32> to vector<2x16x1xf32>
    %9 = vector.broadcast %8 : vector<2x16x1xf32> to vector<2x16x32xf32>
    %10 = arith.subf %6, %9 : vector<2x16x32xf32>
    %11 = math.exp %10 : vector<2x16x32xf32>
    %cst_15 = arith.constant dense<0.000000e+00> : vector<2x16xf32>
    %12 = vector.multi_reduction <add>, %11, %cst_15 [2] : vector<2x16x32xf32> to vector<2x16xf32>
    %13 = vector.shape_cast %12 : vector<2x16xf32> to vector<2x16x1xf32>
    %14 = tpu.reciprocal %13 {approx = true} : vector<2x16x1xf32> -> vector<2x16x1xf32>
    %15 = arith.mulf %13, %14 : vector<2x16x1xf32>
    %cst_16 = arith.constant 2.000000e+00 : f32
    %16 = vector.broadcast %cst_16 : f32 to vector<2x16x1xf32>
    %17 = arith.subf %16, %15 : vector<2x16x1xf32>
    %18 = arith.mulf %14, %17 : vector<2x16x1xf32>
    "tpu.trace_start"() <{level = 10 : i32, message = "bts,bsn->btn"}> : () -> ()
    %cst_17 = arith.constant dense<0.000000e+00> : vector<2x16x80xf32>
    %19 = tpu.matmul %11, %3, %cst_17 {dimension_numbers = #tpu.dot_dimension_numbers<[2], [1], [1], [2], [0, 0, 0, 1, 1, 2], [0], [0]>, precision = #tpu.contract_precision<fp32>} : vector<2x16x32xf32>, vector<2x32x80xf32>, vector<2x16x80xf32> -> vector<2x16x80xf32>
    "tpu.trace_stop"() : () -> ()
    %20 = vector.broadcast %18 : vector<2x16x1xf32> to vector<2x16x80xf32>
    %21 = arith.mulf %19, %20 : vector<2x16x80xf32>
    %22 = vector.broadcast %4 : vector<1x1x80xf32> to vector<2x16x80xf32>
    %23 = arith.addf %21, %22 : vector<2x16x80xf32>
    %c0_18 = arith.constant 0 : index
    %c0_19 = arith.constant 0 : index
    %c0_20 = arith.constant 0 : index
    %24 = vector.load %arg5[%c0_18, %c0_19, %c0_20] : memref<2x16x80xf32, #tpu.memory_space<vmem>>, vector<2x16x80xf32>
    tpu.vector_store %arg5[%c0_18, %c0_19, %c0_20], %23 {strides = array<i32>} : memref<2x16x80xf32, #tpu.memory_space<vmem>>, vector<2x16x80xf32>,
    return
  }
}

</mosaic_0001>

<llo_original>
// kernel: tpu_custom_call.1
$region0: #{tpu_custom_call.1}
  #allocation0 [shape = 'u32[]', space=smem, size = 0x4, offset = 0x4, fixed_abs, tag = 'smem constant byte address 0x4 - core index']
  #allocation1 [shape = 'u32[144,128]{1,0:T(1,128)}', space=vmem, size = 0x12000, scoped, tag = 'internal scratch']
  %s0 = inlined_call_operand.hbm [shape: f32[2,16,64], index: 0, kind: input, shape index: {}]
  %s1 = inlined_call_operand.hbm [shape: f32[2,32,64], index: 1, kind: input, shape index: {}]
  %s2 = inlined_call_operand.hbm [shape: f32[2,16,32], index: 2, kind: input, shape index: {}]
  %s3 = inlined_call_operand.hbm [shape: f32[2,32,80], index: 3, kind: input, shape index: {}]
  %s4 = inlined_call_operand.vmem [shape: f32[1,1,80], index: 4, kind: input, shape index: {}]
  %s5 = inlined_call_operand.hbm [shape: f32[2,16,80], index: 5, kind: output, shape index: {}]
  %s6 = sld [smem:[#allocation0]]
  $region46: #{tpu_custom_call.1} parent=0
    _
  %s8 = ssub.s32 1, %s6
  %s9 = scalar_select 0, %s8, %s6
  $region1: #{tpu_custom_call.1} parent=0
    #allocation2 [shape = 'u8[16384]{0}', space=vmem, size = 0x4000, scoped, tag = 'input window, operand 0, single buffered']
    #allocation3 [shape = 's32[1]{0}', space=sflag, size = 0x4, scoped, tag = 'scoped memory for tpu_custom_call.1']
    #allocation4 [shape = 's32[1]{0}', space=sflag, size = 0x4, scoped, tag = 'scoped memory for tpu_custom_call.1']
    #allocation5 [shape = 'u8[32768]{0}', space=vmem, size = 0x8000, scoped, tag = 'input window, operand 1, single buffered']
    #allocation6 [shape = 's32[1]{0}', space=sflag, size = 0x4, scoped, tag = 'scoped memory for tpu_custom_call.1']
    #allocation7 [shape = 'u8[16384]{0}', space=vmem, size = 0x4000, scoped, tag = 'input window, operand 2, single buffered']
    #allocation8 [shape = 'u8[32768]{0}', space=vmem, size = 0x8000, scoped, tag = 'input window, operand 3, single buffered']
    #allocation9 [shape = 's32[1]{0}', space=sflag, size = 0x4, scoped, tag = 'scoped memory for tpu_custom_call.1']
    #allocation10 [shape = 'u8[16384]{0}', space=vmem, size = 0x4000, scoped, tag = 'output window, operand 0, single buffered']
    %10 = vsyncpa [#allocation3], 0
    %11 = vsyncpa [#allocation6], 0
    %12 = vsyncpa [#allocation9], 0
    %13 = vsyncpa [#allocation4], 0
    // Predicated region
    $region2: #{tpu_custom_call.1} parent=1 // pred_check
      _
    $region3: #{tpu_custom_call.1} parent=1 // pred_check_branch
      %15 = sbr.rel (0) target = $region5
    $region4: #{tpu_custom_call.1} parent=1 // pred_region
      %s17 = ssub.s32 512, 512
      %18 = vsyncadd [#allocation3], %s17
      %s19 = sshll.u32 [#allocation2], 4
      %s20 = int_to_ptr.vmem [resolvable:$true] %s19
      %25 = dma.hbm_to_vmem [thread:$0]  %s0, 512, %s20, [#allocation3], 128, 128, 8
    $region5: #{tpu_custom_call.1} parent=1 // pred_fallthru
      _
    // Predicated region
    $region6: #{tpu_custom_call.1} parent=1 // pred_check
      _
    $region7: #{tpu_custom_call.1} parent=1 // pred_check_branch
      %27 = sbr.rel (0) target = $region9
    $region8: #{tpu_custom_call.1} parent=1 // pred_region
      %s29 = ssub.s32 1024, 1024
      %30 = vsyncadd [#allocation6], %s29
      %s31 = sshll.u32 [#allocation5], 4
      %s32 = int_to_ptr.vmem [resolvable:$true] %s31
      %37 = dma.hbm_to_vmem [thread:$0]  %s1, 1024, %s32, [#allocation6], 128, 128, 8
    $region9: #{tpu_custom_call.1} parent=1 // pred_fallthru
      _
    // Predicated region
    $region10: #{tpu_custom_call.1} parent=1 // pred_check
      _
    $region11: #{tpu_custom_call.1} parent=1 // pred_check_branch
      %39 = sbr.rel (0) target = $region13
    $region12: #{tpu_custom_call.1} parent=1 // pred_region
      %s41 = ssub.s32 512, 512
      %42 = vsyncadd [#allocation6], %s41
      %s43 = sshll.u32 [#allocation7], 4
      %s44 = int_to_ptr.vmem [resolvable:$true] %s43
      %49 = dma.hbm_to_vmem [thread:$0]  %s2, 512, %s44, [#allocation6], 128, 128, 8
    $region13: #{tpu_custom_call.1} parent=1 // pred_fallthru
      _
    // Predicated region
    $region14: #{tpu_custom_call.1} parent=1 // pred_check
      _
    $region15: #{tpu_custom_call.1} parent=1 // pred_check_branch
      %51 = sbr.rel (0) target = $region17
    $region16: #{tpu_custom_call.1} parent=1 // pred_region
      %s53 = ssub.s32 1024, 1024
      %54 = vsyncadd [#allocation9], %s53
      %s55 = sshll.u32 [#allocation8], 4
      %s56 = int_to_ptr.vmem [resolvable:$true] %s55
      %61 = dma.hbm_to_vmem [thread:$0]  %s3, 1024, %s56, [#allocation9], 128, 128, 8
    $region17: #{tpu_custom_call.1} parent=1 // pred_fallthru
      _
    // Predicated region
    $region18: #{tpu_custom_call.1} parent=1 // pred_check
      _
    $region19: #{tpu_custom_call.1} parent=1 // pred_check_branch
      %63 = sbr.rel (0) target = $region21
    $region20: #{tpu_custom_call.1} parent=1 // pred_region
      _
    $region21: #{tpu_custom_call.1} parent=1 // pred_fallthru
      _
    // Predicated region
    $region22: #{tpu_custom_call.1} parent=1 // pred_check
      _
    $region23: #{tpu_custom_call.1} parent=1 // pred_check_branch
      %65 = sbr.rel (0) target = $region25
    $region24: #{tpu_custom_call.1} parent=1 // pred_region
      %66 = dma.done [#allocation3], 512
    $region25: #{tpu_custom_call.1} parent=1 // pred_fallthru
      _
    // Predicated region
    $region26: #{tpu_custom_call.1} parent=1 // pred_check
      _
    $region27: #{tpu_custom_call.1} parent=1 // pred_check_branch
      %68 = sbr.rel (0) target = $region29
    $region28: #{tpu_custom_call.1} parent=1 // pred_region
      %69 = dma.done [#allocation6], 1024
    $region29: #{tpu_custom_call.1} parent=1 // pred_fallthru
      _
    // Predicated region
    $region30: #{tpu_custom_call.1} parent=1 // pred_check
      _
    $region31: #{tpu_custom_call.1} parent=1 // pred_check_branch
      %71 = sbr.rel (0) target = $region33
    $region32: #{tpu_custom_call.1} parent=1 // pred_region
      %72 = dma.done [#allocation6], 512
    $region33: #{tpu_custom_call.1} parent=1 // pred_fallthru
      _
    // Predicated region
    $region34: #{tpu_custom_call.1} parent=1 // pred_check
      _
    $region35: #{tpu_custom_call.1} parent=1 // pred_check_branch
      %74 = sbr.rel (0) target = $region37
    $region36: #{tpu_custom_call.1} parent=1 // pred_region
      %75 = dma.done [#allocation9], 1024
    $region37: #{tpu_custom_call.1} parent=1 // pred_fallthru
      _
    %v76 = vld [vmem:[#allocation2] sm:$0xff]
    %v77 = vld [vmem:[#allocation2 + $0x8] sm:$0xff]
    %v78 = vld [vmem:[#allocation2 + $0x10] sm:$0xff]
    %v79 = vld [vmem:[#allocation2 + $0x18] sm:$0xff]
    %v80 = vld [vmem:[#allocation5] sm:$0xff]
    %v81 = vld [vmem:[#allocation5 + $0x8] sm:$0xff]
    %v82 = vld [vmem:[#allocation5 + $0x10] sm:$0xff]
    %v83 = vld [vmem:[#allocation5 + $0x18] sm:$0xff]
    %v84 = vld [vmem:[#allocation5 + $0x20] sm:$0xff]
    %v85 = vld [vmem:[#allocation5 + $0x28] sm:$0xff]
    %v86 = vld [vmem:[#allocation5 + $0x30] sm:$0xff]
    %v87 = vld [vmem:[#allocation5 + $0x38] sm:$0xff]
    %v88 = vld [vmem:[#allocation7] sm:$0xff]
    %v89 = vld [vmem:[#allocation7 + $0x8] sm:$0xff]
    %v90 = vld [vmem:[#allocation7 + $0x10] sm:$0xff]
    %v91 = vld [vmem:[#allocation7 + $0x18] sm:$0xff]
    %v92 = vld [vmem:[#allocation8] sm:$0xff]
    %v93 = vld [vmem:[#allocation8 + $0x8] sm:$0xff]
    %v94 = vld [vmem:[#allocation8 + $0x10] sm:$0xff]
    %v95 = vld [vmem:[#allocation8 + $0x18] sm:$0xff]
    %v96 = vld [vmem:[#allocation8 + $0x20] sm:$0xff]
    %v97 = vld [vmem:[#allocation8 + $0x28] sm:$0xff]
    %v98 = vld [vmem:[#allocation8 + $0x30] sm:$0xff]
    %v99 = vld [vmem:[#allocation8 + $0x38] sm:$0xff]
    %v100 = vld [vmem:[%s4] sm:$0x1]
    %vm101 = vcmask 523264
    %v103 = vsel %vm101, %v76, 0
    %v106 = vsel %vm101, %v77, 0
    %v109 = vsel %vm101, %v80, 0
    %v112 = vsel %vm101, %v81, 0
    %v115 = vsel %vm101, %v82, 0
    %v118 = vsel %vm101, %v83, 0
    %120 = vmatprep.subr.mxu0 0.0
    %v121 = vand.u32 %v109, 4294901760
    %122 = vmatpush1.xpose.msra.mxu0 %v121
    %123 = vmatprep.subr.mxu0 0.0
    %v124 = vand.u32 %v112, 4294901760
    %125 = vmatpush1.xpose.msra.mxu0 %v124
    %126 = vmatprep.subr.mxu0 0.0
    %v127 = vand.u32 %v115, 4294901760
    %128 = vmatpush1.xpose.msra.mxu0 %v127
    %129 = vmatprep.subr.mxu0 0.0
    %v130 = vand.u32 %v118, 4294901760
    %131 = vmatpush1.xpose.msra.mxu0 %v130
    %132 = vmatprep.subr.mxu0 0.0
    %133 = vmatpush1.xpose.msra.mxu0 0.0
    %134 = vmatprep.subr.mxu0 0.0
    %135 = vmatpush1.xpose.msra.mxu0 0.0
    %136 = vmatprep.subr.mxu0 0.0
    %137 = vmatpush1.xpose.msra.mxu0 0.0
    %138 = vmatprep.subr.mxu0 0.0
    %139 = vmatpush1.xpose.msra.mxu0 0.0
    %140 = vmatprep.subr.mxu0 0.0
    %141 = vmatpush1.xpose.msra.mxu0 0.0
    %142 = vmatprep.subr.mxu0 0.0
    %143 = vmatpush1.xpose.msra.mxu0 0.0
    %144 = vmatprep.subr.mxu0 0.0
    %145 = vmatpush1.xpose.msra.mxu0 0.0
    %146 = vmatprep.subr.mxu0 0.0
    %147 = vmatpush1.xpose.msra.mxu0 0.0
    %148 = vmatprep.subr.mxu0 0.0
    %149 = vmatpush1.xpose.msra.mxu0 0.0
    %150 = vmatprep.subr.mxu0 0.0
    %151 = vmatpush1.xpose.msra.mxu0 0.0
    %152 = vmatprep.subr.mxu0 0.0
    %153 = vmatpush1.xpose.msra.mxu0 0.0
    %154 = vmatprep.subr.mxu0 0.0
    %155 = vmatpush1.xpose.msra.mxu0 0.0
    %156 = vmatprep.subr.mxu0 0.0
    %157 = vmatpush1.xpose.msra.mxu0 0.0
    %158 = vmatprep.subr.mxu0 0.0
    %159 = vmatpush1.xpose.msra.mxu0 0.0
    %160 = vmatprep.subr.mxu0 0.0
    %161 = vmatpush1.xpose.msra.mxu0 0.0
    %162 = vmatprep.subr.mxu0 0.0
    %163 = vmatpush1.xpose.msra.mxu0 0.0
    %164 = vmatprep.subr.mxu0 0.0
    %165 = vmatpush1.xpose.msra.mxu0 0.0
    %166 = vmatprep.subr.mxu0 0.0
    %167 = vmatpush1.xpose.msra.mxu0 0.0
    %168 = vmatprep.subr.mxu0 0.0
    %169 = vmatpush1.xpose.msra.mxu0 0.0
    %170 = vmatprep.subr.mxu0 0.0
    %171 = vmatpush1.xpose.msra.mxu0 0.0
    %172 = vmatprep.subr.mxu0 0.0
    %173 = vmatpush1.xpose.msra.mxu0 0.0
    %174 = vmatprep.subr.mxu0 0.0
    %175 = vmatpush1.xpose.msra.mxu0 0.0
    %176 = vmatprep.subr.mxu0 0.0
    %177 = vmatpush1.xpose.msra.mxu0 0.0
    %178 = vmatprep.subr.mxu0 0.0
    %179 = vmatpush1.xpose.msra.mxu0 0.0
    %180 = vmatprep.subr.mxu0 0.0
    %181 = vmatpush1.xpose.msra.mxu0 0.0
    %182 = vmatprep.subr.mxu0 0.0
    %183 = vmatpush1.xpose.msra.mxu0 0.0
    %184 = vmatprep.subr.mxu0 0.0
    %185 = vmatpush1.xpose.msra.mxu0 0.0
    %186 = vmatprep.subr.mxu0 0.0
    %187 = vmatpush1.xpose.msra.mxu0 0.0
    %188 = vmatprep.mubr.f32.mxu0 0.0
    %v189 = vand.u32 %v103, 4294901760
    %v190 = vsub.f32 %v103, %v189
    %v191 = vand.u32 %v190, 4294901760
    %v192 = vsub.f32 %v190, %v191
    %v193 = vand.u32 %v192, 4294901760
    %194 = vmatmul.mubr.f32.gmra.mrb[0].mxu0 %v193
    %v195 = vpop.f32.mrb[0].mxu0
    %v196 = vadd.f32 %v88, %v195
    %v197 = vpop.f32.mrb[0].mxu0
    %198 = vmatprep.mubr.f32.mxu0 0.0
    %v199 = vand.u32 %v106, 4294901760
    %v200 = vsub.f32 %v106, %v199
    %v201 = vand.u32 %v200, 4294901760
    %v202 = vsub.f32 %v200, %v201
    %v203 = vand.u32 %v202, 4294901760
    %204 = vmatmul.mubr.f32.gmra.mrb[0].mxu0 %v203
    %v205 = vpop.f32.mrb[0].mxu0
    %v206 = vadd.f32 %v89, %v205
    %v207 = vpop.f32.mrb[0].mxu0
    %208 = vdwg.mxu0
    %209 = vmatprep.subr.mxu0 0.0
    %v210 = vand.u32 %v109, 4294901760
    %v211 = vsub.f32 %v109, %v210
    %v212 = vand.u32 %v211, 4294901760
    %v213 = vsub.f32 %v211, %v212
    %v214 = vand.u32 %v213, 4294901760
    %215 = vmatpush1.xpose.msra.mxu0 %v214
    %216 = vmatprep.subr.mxu0 0.0
    %v217 = vand.u32 %v112, 4294901760
    %v218 = vsub.f32 %v112, %v217
    %v219 = vand.u32 %v218, 4294901760
    %v220 = vsub.f32 %v218, %v219
    %v221 = vand.u32 %v220, 4294901760
    %222 = vmatpush1.xpose.msra.mxu0 %v221
    %223 = vmatprep.subr.mxu0 0.0
    %v224 = vand.u32 %v115, 4294901760
    %v225 = vsub.f32 %v115, %v224
    %v226 = vand.u32 %v225, 4294901760
    %v227 = vsub.f32 %v225, %v226
    %v228 = vand.u32 %v227, 4294901760
    %229 = vmatpush1.xpose.msra.mxu0 %v228
    %230 = vmatprep.subr.mxu0 0.0
    %v231 = vand.u32 %v118, 4294901760
    %v232 = vsub.f32 %v118, %v231
    %v233 = vand.u32 %v232, 4294901760
    %v234 = vsub.f32 %v232, %v233
    %v235 = vand.u32 %v234, 4294901760
    %236 = vmatpush1.xpose.msra.mxu0 %v235
    %237 = vmatprep.subr.mxu0 0.0
    %238 = vmatpush1.xpose.msra.mxu0 0.0
    %239 = vmatprep.subr.mxu0 0.0
    %240 = vmatpush1.xpose.msra.mxu0 0.0
    %241 = vmatprep.subr.mxu0 0.0
    %242 = vmatpush1.xpose.msra.mxu0 0.0
    %243 = vmatprep.subr.mxu0 0.0
    %244 = vmatpush1.xpose.msra.mxu0 0.0
    %245 = vmatprep.subr.mxu0 0.0
    %246 = vmatpush1.xpose.msra.mxu0 0.0
    %247 = vmatprep.subr.mxu0 0.0
    %248 = vmatpush1.xpose.msra.mxu0 0.0
    %249 = vmatprep.subr.mxu0 0.0
    %250 = vmatpush1.xpose.msra.mxu0 0.0
    %251 = vmatprep.subr.mxu0 0.0
    %252 = vmatpush1.xpose.msra.mxu0 0.0
    %253 = vmatprep.subr.mxu0 0.0
    %254 = vmatpush1.xpose.msra.mxu0 0.0
    %255 = vmatprep.subr.mxu0 0.0
    %256 = vmatpush1.xpose.msra.mxu0 0.0
    %257 = vmatprep.subr.mxu0 0.0
    %258 = vmatpush1.xpose.msra.mxu0 0.0
    %259 = vmatprep.subr.mxu0 0.0
    %260 = vmatpush1.xpose.msra.mxu0 0.0
    %261 = vmatprep.subr.mxu0 0.0
    %262 = vmatpush1.xpose.msra.mxu0 0.0
    %263 = vmatprep.subr.mxu0 0.0
    %264 = vmatpush1.xpose.msra.mxu0 0.0
    %265 = vmatprep.subr.mxu0 0.0
    %266 = vmatpush1.xpose.msra.mxu0 0.0
    %267 = vmatprep.subr.mxu0 0.0
    %268 = vmatpush1.xpose.msra.mxu0 0.0
    %269 = vmatprep.subr.mxu0 0.0
    %270 = vmatpush1.xpose.msra.mxu0 0.0
    %271 = vmatprep.subr.mxu0 0.0
    %272 = vmatpush1.xpose.msra.mxu0 0.0
    %273 = vmatprep.subr.mxu0 0.0
    %274 = vmatpush1.xpose.msra.mxu0 0.0
    %275 = vmatprep.subr.mxu0 0.0
    %276 = vmatpush1.xpose.msra.mxu0 0.0
    %277 = vmatprep.subr.mxu0 0.0
    %278 = vmatpush1.xpose.msra.mxu0 0.0
    %279 = vmatprep.subr.mxu0 0.0
    %280 = vmatpush1.xpose.msra.mxu0 0.0
    %281 = vmatprep.subr.mxu0 0.0
    %282 = vmatpush1.xpose.msra.mxu0 0.0
    %283 = vmatprep.subr.mxu0 0.0
    %284 = vmatpush1.xpose.msra.mxu0 0.0
    %285 = vmatprep.subr.mxu0 0.0
    %286 = vmatpush1.xpose.msra.mxu0 0.0
    %287 = vmatprep.subr.mxu0 0.0
    %288 = vmatpush1.xpose.msra.mxu0 0.0
    %289 = vmatprep.subr.mxu0 0.0
    %290 = vmatpush1.xpose.msra.mxu0 0.0
    %291 = vmatprep.subr.mxu0 0.0
    %292 = vmatpush1.xpose.msra.mxu0 0.0
    %293 = vmatprep.mubr.f32.mxu0 0.0
    %v294 = vand.u32 %v103, 4294901760
    %295 = vmatmul.mubr.f32.gmra.mrb[0].mxu0 %v294
    %v296 = vpop.f32.mrb[0].mxu0
    %v297 = vadd.f32 %v196, %v296
    %v298 = vpop.f32.mrb[0].mxu0
    %299 = vmatprep.mubr.f32.mxu0 0.0
    %v300 = vand.u32 %v106, 4294901760
    %301 = vmatmul.mubr.f32.gmra.mrb[0].mxu0 %v300
    %v302 = vpop.f32.mrb[0].mxu0
    %v303 = vadd.f32 %v206, %v302
    %v304 = vpop.f32.mrb[0].mxu0
    %305 = vdwg.mxu0
    %306 = vmatprep.subr.mxu0 0.0
    %v307 = vand.u32 %v109, 4294901760
    %v308 = vsub.f32 %v109, %v307
    %309 = vmatpush1.xpose.msra.mxu0 %v308
    %310 = vmatprep.subr.mxu0 0.0
    %v311 = vand.u32 %v112, 4294901760
    %v312 = vsub.f32 %v112, %v311
    %313 = vmatpush1.xpose.msra.mxu0 %v312
    %314 = vmatprep.subr.mxu0 0.0
    %v315 = vand.u32 %v115, 4294901760
    %v316 = vsub.f32 %v115, %v315
    %317 = vmatpush1.xpose.msra.mxu0 %v316
    %318 = vmatprep.subr.mxu0 0.0
    %v319 = vand.u32 %v118, 4294901760
    %v320 = vsub.f32 %v118, %v319
    %321 = vmatpush1.xpose.msra.mxu0 %v320
    %322 = vmatprep.subr.mxu0 0.0
    %323 = vmatpush1.xpose.msra.mxu0 0.0
    %324 = vmatprep.subr.mxu0 0.0
    %325 = vmatpush1.xpose.msra.mxu0 0.0
    %326 = vmatprep.subr.mxu0 0.0
    %327 = vmatpush1.xpose.msra.mxu0 0.0
    %328 = vmatprep.subr.mxu0 0.0
    %329 = vmatpush1.xpose.msra.mxu0 0.0
    %330 = vmatprep.subr.mxu0 0.0
    %331 = vmatpush1.xpose.msra.mxu0 0.0
    %332 = vmatprep.subr.mxu0 0.0
    %333 = vmatpush1.xpose.msra.mxu0 0.0
    %334 = vmatprep.subr.mxu0 0.0
    %335 = vmatpush1.xpose.msra.mxu0 0.0
    %336 = vmatprep.subr.mxu0 0.0
    %337 = vmatpush1.xpose.msra.mxu0 0.0
    %338 = vmatprep.subr.mxu0 0.0
    %339 = vmatpush1.xpose.msra.mxu0 0.0
    %340 = vmatprep.subr.mxu0 0.0
    %341 = vmatpush1.xpose.msra.mxu0 0.0
    %342 = vmatprep.subr.mxu0 0.0
    %343 = vmatpush1.xpose.msra.mxu0 0.0
    %344 = vmatprep.subr.mxu0 0.0
    %345 = vmatpush1.xpose.msra.mxu0 0.0
    %346 = vmatprep.subr.mxu0 0.0
    %347 = vmatpush1.xpose.msra.mxu0 0.0
    %348 = vmatprep.subr.mxu0 0.0
    %349 = vmatpush1.xpose.msra.mxu0 0.0
    %350 = vmatprep.subr.mxu0 0.0
    %351 = vmatpush1.xpose.msra.mxu0 0.0
    %352 = vmatprep.subr.mxu0 0.0
    %353 = vmatpush1.xpose.msra.mxu0 0.0
    %354 = vmatprep.subr.mxu0 0.0
    %355 = vmatpush1.xpose.msra.mxu0 0.0
    %356 = vmatprep.subr.mxu0 0.0
    %357 = vmatpush1.xpose.msra.mxu0 0.0
    %358 = vmatprep.subr.mxu0 0.0
    %359 = vmatpush1.xpose.msra.mxu0 0.0
    %360 = vmatprep.subr.mxu0 0.0
    %361 = vmatpush1.xpose.msra.mxu0 0.0
    %362 = vmatprep.subr.mxu0 0.0
    %363 = vmatpush1.xpose.msra.mxu0 0.0
    %364 = vmatprep.subr.mxu0 0.0
    %365 = vmatpush1.xpose.msra.mxu0 0.0
    %366 = vmatprep.subr.mxu0 0.0
    %367 = vmatpush1.xpose.msra.mxu0 0.0
    %368 = vmatprep.subr.mxu0 0.0
    %369 = vmatpush1.xpose.msra.mxu0 0.0
    %370 = vmatprep.subr.mxu0 0.0
    %371 = vmatpush1.xpose.msra.mxu0 0.0
    %372 = vmatprep.subr.mxu0 0.0
    %373 = vmatpush1.xpose.msra.mxu0 0.0
    %374 = vmatprep.subr.mxu0 0.0
    %375 = vmatpush1.xpose.msra.mxu0 0.0
    %376 = vmatprep.subr.mxu0 0.0
    %377 = vmatpush1.xpose.msra.mxu0 0.0
    %378 = vmatprep.mubr.f32.mxu0 0.0
    %v379 = vand.u32 %v103, 4294901760
    %v380 = vsub.f32 %v103, %v379
    %381 = vmatmul.mubr.f32.gmra.mrb[0].mxu0 %v380
    %v382 = vpop.f32.mrb[0].mxu0
    %v383 = vadd.f32 %v297, %v382
    %v384 = vpop.f32.mrb[0].mxu0
    %385 = vmatprep.mubr.f32.mxu0 0.0
    %v386 = vand.u32 %v106, 4294901760
    %v387 = vsub.f32 %v106, %v386
    %388 = vmatmul.mubr.f32.gmra.mrb[0].mxu0 %v387
    %v389 = vpop.f32.mrb[0].mxu0
    %v390 = vadd.f32 %v303, %v389
    %v391 = vpop.f32.mrb[0].mxu0
    %392 = vdwg.mxu0
    %393 = vmatprep.subr.mxu0 0.0
    %v394 = vand.u32 %v109, 4294901760
    %395 = vmatpush1.xpose.msra.mxu0 %v394
    %396 = vmatprep.subr.mxu0 0.0
    %v397 = vand.u32 %v112, 4294901760
    %398 = vmatpush1.xpose.msra.mxu0 %v397
    %399 = vmatprep.subr.mxu0 0.0
    %v400 = vand.u32 %v115, 4294901760
    %401 = vmatpush1.xpose.msra.mxu0 %v400
    %402 = vmatprep.subr.mxu0 0.0
    %v403 = vand.u32 %v118, 4294901760
    %404 = vmatpush1.xpose.msra.mxu0 %v403
    %405 = vmatprep.subr.mxu0 0.0
    %406 = vmatpush1.xpose.msra.mxu0 0.0
    %407 = vmatprep.subr.mxu0 0.0
    %408 = vmatpush1.xpose.msra.mxu0 0.0
    %409 = vmatprep.subr.mxu0 0.0
    %410 = vmatpush1.xpose.msra.mxu0 0.0
    %411 = vmatprep.subr.mxu0 0.0
    %412 = vmatpush1.xpose.msra.mxu0 0.0
    %413 = vmatprep.subr.mxu0 0.0
    %414 = vmatpush1.xpose.msra.mxu0 0.0
    %415 = vmatprep.subr.mxu0 0.0
    %416 = vmatpush1.xpose.msra.mxu0 0.0
    %417 = vmatprep.subr.mxu0 0.0
    %418 = vmatpush1.xpose.msra.mxu0 0.0
    %419 = vmatprep.subr.mxu0 0.0
    %420 = vmatpush1.xpose.msra.mxu0 0.0
    %421 = vmatprep.subr.mxu0 0.0
    %422 = vmatpush1.xpose.msra.mxu0 0.0
    %423 = vmatprep.subr.mxu0 0.0
    %424 = vmatpush1.xpose.msra.mxu0 0.0
    %425 = vmatprep.subr.mxu0 0.0
    %426 = vmatpush1.xpose.msra.mxu0 0.0
    %427 = vmatprep.subr.mxu0 0.0
    %428 = vmatpush1.xpose.msra.mxu0 0.0
    %429 = vmatprep.subr.mxu0 0.0
    %430 = vmatpush1.xpose.msra.mxu0 0.0
    %431 = vmatprep.subr.mxu0 0.0
    %432 = vmatpush1.xpose.msra.mxu0 0.0
    %433 = vmatprep.subr.mxu0 0.0
    %434 = vmatpush1.xpose.msra.mxu0 0.0
    %435 = vmatprep.subr.mxu0 0.0
    %436 = vmatpush1.xpose.msra.mxu0 0.0
    %437 = vmatprep.subr.mxu0 0.0
    %438 = vmatpush1.xpose.msra.mxu0 0.0
    %439 = vmatprep.subr.mxu0 0.0
    %440 = vmatpush1.xpose.msra.mxu0 0.0
    %441 = vmatprep.subr.mxu0 0.0
    %442 = vmatpush1.xpose.msra.mxu0 0.0
    %443 = vmatprep.subr.mxu0 0.0
    %444 = vmatpush1.xpose.msra.mxu0 0.0
    %445 = vmatprep.subr.mxu0 0.0
    %446 = vmatpush1.xpose.msra.mxu0 0.0
    %447 = vmatprep.subr.mxu0 0.0
    %448 = vmatpush1.xpose.msra.mxu0 0.0
    %449 = vmatprep.subr.mxu0 0.0
    %450 = vmatpush1.xpose.msra.mxu0 0.0
    %451 = vmatprep.subr.mxu0 0.0
    %452 = vmatpush1.xpose.msra.mxu0 0.0
    %453 = vmatprep.subr.mxu0 0.0
    %454 = vmatpush1.xpose.msra.mxu0 0.0
    %455 = vmatprep.subr.mxu0 0.0
    %456 = vmatpush1.xpose.msra.mxu0 0.0
    %457 = vmatprep.subr.mxu0 0.0
    %458 = vmatpush1.xpose.msra.mxu0 0.0
    %459 = vmatprep.subr.mxu0 0.0
    %460 = vmatpush1.xpose.msra.mxu0 0.0
    %461 = vmatprep.mubr.f32.mxu0 0.0
    %v462 = vand.u32 %v103, 4294901760
    %v463 = vsub.f32 %v103, %v462
    %v464 = vand.u32 %v463, 4294901760
    %465 = vmatmul.mubr.f32.gmra.mrb[0].mxu0 %v464
    %v466 = vpop.f32.mrb[0].mxu0
    %v467 = vadd.f32 %v383, %v466
    %v468 = vpop.f32.mrb[0].mxu0
    %469 = vmatprep.mubr.f32.mxu0 0.0
    %v470 = vand.u32 %v106, 4294901760
    %v471 = vsub.f32 %v106, %v470
    %v472 = vand.u32 %v471, 4294901760
    %473 = vmatmul.mubr.f32.gmra.mrb[0].mxu0 %v472
    %v474 = vpop.f32.mrb[0].mxu0
    %v475 = vadd.f32 %v390, %v474
    %v476 = vpop.f32.mrb[0].mxu0
    %477 = vdwg.mxu0
    %478 = vmatprep.subr.mxu0 0.0
    %v479 = vand.u32 %v109, 4294901760
    %v480 = vsub.f32 %v109, %v479
    %v481 = vand.u32 %v480, 4294901760
    %482 = vmatpush1.xpose.msra.mxu0 %v481
    %483 = vmatprep.subr.mxu0 0.0
    %v484 = vand.u32 %v112, 4294901760
    %v485 = vsub.f32 %v112, %v484
    %v486 = vand.u32 %v485, 4294901760
    %487 = vmatpush1.xpose.msra.mxu0 %v486
    %488 = vmatprep.subr.mxu0 0.0
    %v489 = vand.u32 %v115, 4294901760
    %v490 = vsub.f32 %v115, %v489
    %v491 = vand.u32 %v490, 4294901760
    %492 = vmatpush1.xpose.msra.mxu0 %v491
    %493 = vmatprep.subr.mxu0 0.0
    %v494 = vand.u32 %v118, 4294901760
    %v495 = vsub.f32 %v118, %v494
    %v496 = vand.u32 %v495, 4294901760
    %497 = vmatpush1.xpose.msra.mxu0 %v496
    %498 = vmatprep.subr.mxu0 0.0
    %499 = vmatpush1.xpose.msra.mxu0 0.0
    %500 = vmatprep.subr.mxu0 0.0
    %501 = vmatpush1.xpose.msra.mxu0 0.0
    %502 = vmatprep.subr.mxu0 0.0
    %503 = vmatpush1.xpose.msra.mxu0 0.0
    %504 = vmatprep.subr.mxu0 0.0
    %505 = vmatpush1.xpose.msra.mxu0 0.0
    %506 = vmatprep.subr.mxu0 0.0
    %507 = vmatpush1.xpose.msra.mxu0 0.0
    %508 = vmatprep.subr.mxu0 0.0
    %509 = vmatpush1.xpose.msra.mxu0 0.0
    %510 = vmatprep.subr.mxu0 0.0
    %511 = vmatpush1.xpose.msra.mxu0 0.0
    %512 = vmatprep.subr.mxu0 0.0
    %513 = vmatpush1.xpose.msra.mxu0 0.0
    %514 = vmatprep.subr.mxu0 0.0
    %515 = vmatpush1.xpose.msra.mxu0 0.0
    %516 = vmatprep.subr.mxu0 0.0
    %517 = vmatpush1.xpose.msra.mxu0 0.0
    %518 = vmatprep.subr.mxu0 0.0
    %519 = vmatpush1.xpose.msra.mxu0 0.0
    %520 = vmatprep.subr.mxu0 0.0
    %521 = vmatpush1.xpose.msra.mxu0 0.0
    %522 = vmatprep.subr.mxu0 0.0
    %523 = vmatpush1.xpose.msra.mxu0 0.0
    %524 = vmatprep.subr.mxu0 0.0
    %525 = vmatpush1.xpose.msra.mxu0 0.0
    %526 = vmatprep.subr.mxu0 0.0
    %527 = vmatpush1.xpose.msra.mxu0 0.0
    %528 = vmatprep.subr.mxu0 0.0
    %529 = vmatpush1.xpose.msra.mxu0 0.0
    %530 = vmatprep.subr.mxu0 0.0
    %531 = vmatpush1.xpose.msra.mxu0 0.0
    %532 = vmatprep.subr.mxu0 0.0
    %533 = vmatpush1.xpose.msra.mxu0 0.0
    %534 = vmatprep.subr.mxu0 0.0
    %535 = vmatpush1.xpose.msra.mxu0 0.0
    %536 = vmatprep.subr.mxu0 0.0
    %537 = vmatpush1.xpose.msra.mxu0 0.0
    %538 = vmatprep.subr.mxu0 0.0
    %539 = vmatpush1.xpose.msra.mxu0 0.0
    %540 = vmatprep.subr.mxu0 0.0
    %541 = vmatpush1.xpose.msra.mxu0 0.0
    %542 = vmatprep.subr.mxu0 0.0
    %543 = vmatpush1.xpose.msra.mxu0 0.0
    %544 = vmatprep.subr.mxu0 0.0
    %545 = vmatpush1.xpose.msra.mxu0 0.0
    %546 = vmatprep.subr.mxu0 0.0
    %547 = vmatpush1.xpose.msra.mxu0 0.0
    %548 = vmatprep.subr.mxu0 0.0
    %549 = vmatpush1.xpose.msra.mxu0 0.0
    %550 = vmatprep.subr.mxu0 0.0
    %551 = vmatpush1.xpose.msra.mxu0 0.0
    %552 = vmatprep.subr.mxu0 0.0
    %553 = vmatpush1.xpose.msra.mxu0 0.0
    %554 = vmatprep.mubr.f32.mxu0 0.0
    %v555 = vand.u32 %v103, 4294901760
    %556 = vmatmul.mubr.f32.gmra.mrb[0].mxu0 %v555
    %v557 = vpop.f32.mrb[0].mxu0
    %v558 = vadd.f32 %v467, %v557
    %v559 = vpop.f32.mrb[0].mxu0
    %560 = vmatprep.mubr.f32.mxu0 0.0
    %v561 = vand.u32 %v106, 4294901760
    %562 = vmatmul.mubr.f32.gmra.mrb[0].mxu0 %v561
    %v563 = vpop.f32.mrb[0].mxu0
    %v564 = vadd.f32 %v475, %v563
    %v565 = vpop.f32.mrb[0].mxu0
    %566 = vdwg.mxu0
    %567 = vmatprep.subr.mxu0 0.0
    %v568 = vand.u32 %v109, 4294901760
    %569 = vmatpush1.xpose.msra.mxu0 %v568
    %570 = vmatprep.subr.mxu0 0.0
    %v571 = vand.u32 %v112, 4294901760
    %572 = vmatpush1.xpose.msra.mxu0 %v571
    %573 = vmatprep.subr.mxu0 0.0
    %v574 = vand.u32 %v115, 4294901760
    %575 = vmatpush1.xpose.msra.mxu0 %v574
    %576 = vmatprep.subr.mxu0 0.0
    %v577 = vand.u32 %v118, 4294901760
    %578 = vmatpush1.xpose.msra.mxu0 %v577
    %579 = vmatprep.subr.mxu0 0.0
    %580 = vmatpush1.xpose.msra.mxu0 0.0
    %581 = vmatprep.subr.mxu0 0.0
    %582 = vmatpush1.xpose.msra.mxu0 0.0
    %583 = vmatprep.subr.mxu0 0.0
    %584 = vmatpush1.xpose.msra.mxu0 0.0
    %585 = vmatprep.subr.mxu0 0.0
    %586 = vmatpush1.xpose.msra.mxu0 0.0
    %587 = vmatprep.subr.mxu0 0.0
    %588 = vmatpush1.xpose.msra.mxu0 0.0
    %589 = vmatprep.subr.mxu0 0.0
    %590 = vmatpush1.xpose.msra.mxu0 0.0
    %591 = vmatprep.subr.mxu0 0.0
    %592 = vmatpush1.xpose.msra.mxu0 0.0
    %593 = vmatprep.subr.mxu0 0.0
    %594 = vmatpush1.xpose.msra.mxu0 0.0
    %595 = vmatprep.subr.mxu0 0.0
    %596 = vmatpush1.xpose.msra.mxu0 0.0
    %597 = vmatprep.subr.mxu0 0.0
    %598 = vmatpush1.xpose.msra.mxu0 0.0
    %599 = vmatprep.subr.mxu0 0.0
    %600 = vmatpush1.xpose.msra.mxu0 0.0
    %601 = vmatprep.subr.mxu0 0.0
    %602 = vmatpush1.xpose.msra.mxu0 0.0
    %603 = vmatprep.subr.mxu0 0.0
    %604 = vmatpush1.xpose.msra.mxu0 0.0
    %605 = vmatprep.subr.mxu0 0.0
    %606 = vmatpush1.xpose.msra.mxu0 0.0
    %607 = vmatprep.subr.mxu0 0.0
    %608 = vmatpush1.xpose.msra.mxu0 0.0
    %609 = vmatprep.subr.mxu0 0.0
    %610 = vmatpush1.xpose.msra.mxu0 0.0
    %611 = vmatprep.subr.mxu0 0.0
    %612 = vmatpush1.xpose.msra.mxu0 0.0
    %613 = vmatprep.subr.mxu0 0.0
    %614 = vmatpush1.xpose.msra.mxu0 0.0
    %615 = vmatprep.subr.mxu0 0.0
    %616 = vmatpush1.xpose.msra.mxu0 0.0
    %617 = vmatprep.subr.mxu0 0.0
    %618 = vmatpush1.xpose.msra.mxu0 0.0
    %619 = vmatprep.subr.mxu0 0.0
    %620 = vmatpush1.xpose.msra.mxu0 0.0
    %621 = vmatprep.subr.mxu0 0.0
    %622 = vmatpush1.xpose.msra.mxu0 0.0
    %623 = vmatprep.subr.mxu0 0.0
    %624 = vmatpush1.xpose.msra.mxu0 0.0
    %625 = vmatprep.subr.mxu0 0.0
    %626 = vmatpush1.xpose.msra.mxu0 0.0
    %627 = vmatprep.subr.mxu0 0.0
    %628 = vmatpush1.xpose.msra.mxu0 0.0
    %629 = vmatprep.subr.mxu0 0.0
    %630 = vmatpush1.xpose.msra.mxu0 0.0
    %631 = vmatprep.subr.mxu0 0.0
    %632 = vmatpush1.xpose.msra.mxu0 0.0
    %633 = vmatprep.subr.mxu0 0.0
    %634 = vmatpush1.xpose.msra.mxu0 0.0
    %635 = vmatprep.mubr.f32.mxu0 0.0
    %v636 = vand.u32 %v103, 4294901760
    %637 = vmatmul.mubr.f32.gmra.mrb[0].mxu0 %v636
    %v638 = vpop.f32.mrb[0].mxu0
    %v639 = vadd.f32 %v558, %v638
    %v640 = vpop.f32.mrb[0].mxu0
    %641 = vmatprep.mubr.f32.mxu0 0.0
    %v642 = vand.u32 %v106, 4294901760
    %643 = vmatmul.mubr.f32.gmra.mrb[0].mxu0 %v642
    %v644 = vpop.f32.mrb[0].mxu0
    %v645 = vadd.f32 %v564, %v644
    %v646 = vpop.f32.mrb[0].mxu0
    %647 = vdwg.mxu0
    %v649 = vsel %vm101, %v78, 0
    %v652 = vsel %vm101, %v79, 0
    %v655 = vsel %vm101, %v84, 0
    %v658 = vsel %vm101, %v85, 0
    %v661 = vsel %vm101, %v86, 0
    %v664 = vsel %vm101, %v87, 0
    %666 = vmatprep.subr.mxu0 0.0
    %v667 = vand.u32 %v655, 4294901760
    %668 = vmatpush1.xpose.msra.mxu0 %v667
    %669 = vmatprep.subr.mxu0 0.0
    %v670 = vand.u32 %v658, 4294901760
    %671 = vmatpush1.xpose.msra.mxu0 %v670
    %672 = vmatprep.subr.mxu0 0.0
    %v673 = vand.u32 %v661, 4294901760
    %674 = vmatpush1.xpose.msra.mxu0 %v673
    %675 = vmatprep.subr.mxu0 0.0
    %v676 = vand.u32 %v664, 4294901760
    %677 = vmatpush1.xpose.msra.mxu0 %v676
    %678 = vmatprep.subr.mxu0 0.0
    %679 = vmatpush1.xpose.msra.mxu0 0.0
    %680 = vmatprep.subr.mxu0 0.0
    %681 = vmatpush1.xpose.msra.mxu0 0.0
    %682 = vmatprep.subr.mxu0 0.0
    %683 = vmatpush1.xpose.msra.mxu0 0.0
    %684 = vmatprep.subr.mxu0 0.0
    %685 = vmatpush1.xpose.msra.mxu0 0.0
    %686 = vmatprep.subr.mxu0 0.0
    %687 = vmatpush1.xpose.msra.mxu0 0.0
    %688 = vmatprep.subr.mxu0 0.0
    %689 = vmatpush1.xpose.msra.mxu0 0.0
    %690 = vmatprep.subr.mxu0 0.0
    %691 = vmatpush1.xpose.msra.mxu0 0.0
    %692 = vmatprep.subr.mxu0 0.0
    %693 = vmatpush1.xpose.msra.mxu0 0.0
    %694 = vmatprep.subr.mxu0 0.0
    %695 = vmatpush1.xpose.msra.mxu0 0.0
    %696 = vmatprep.subr.mxu0 0.0
    %697 = vmatpush1.xpose.msra.mxu0 0.0
    %698 = vmatprep.subr.mxu0 0.0
    %699 = vmatpush1.xpose.msra.mxu0 0.0
    %700 = vmatprep.subr.mxu0 0.0
    %701 = vmatpush1.xpose.msra.mxu0 0.0
    %702 = vmatprep.subr.mxu0 0.0
    %703 = vmatpush1.xpose.msra.mxu0 0.0
    %704 = vmatprep.subr.mxu0 0.0
    %705 = vmatpush1.xpose.msra.mxu0 0.0
    %706 = vmatprep.subr.mxu0 0.0
    %707 = vmatpush1.xpose.msra.mxu0 0.0
    %708 = vmatprep.subr.mxu0 0.0
    %709 = vmatpush1.xpose.msra.mxu0 0.0
    %710 = vmatprep.subr.mxu0 0.0
    %711 = vmatpush1.xpose.msra.mxu0 0.0
    %712 = vmatprep.subr.mxu0 0.0
    %713 = vmatpush1.xpose.msra.mxu0 0.0
    %714 = vmatprep.subr.mxu0 0.0
    %715 = vmatpush1.xpose.msra.mxu0 0.0
    %716 = vmatprep.subr.mxu0 0.0
    %717 = vmatpush1.xpose.msra.mxu0 0.0
    %718 = vmatprep.subr.mxu0 0.0
    %719 = vmatpush1.xpose.msra.mxu0 0.0
    %720 = vmatprep.subr.mxu0 0.0
    %721 = vmatpush1.xpose.msra.mxu0 0.0
    %722 = vmatprep.subr.mxu0 0.0
    %723 = vmatpush1.xpose.msra.mxu0 0.0
    %724 = vmatprep.subr.mxu0 0.0
    %725 = vmatpush1.xpose.msra.mxu0 0.0
    %726 = vmatprep.subr.mxu0 0.0
    %727 = vmatpush1.xpose.msra.mxu0 0.0
    %728 = vmatprep.subr.mxu0 0.0
    %729 = vmatpush1.xpose.msra.mxu0 0.0
    %730 = vmatprep.subr.mxu0 0.0
    %731 = vmatpush1.xpose.msra.mxu0 0.0
    %732 = vmatprep.subr.mxu0 0.0
    %733 = vmatpush1.xpose.msra.mxu0 0.0
    %734 = vmatprep.mubr.f32.mxu0 0.0
    %v735 = vand.u32 %v649, 4294901760
    %v736 = vsub.f32 %v649, %v735
    %v737 = vand.u32 %v736, 4294901760
    %v738 = vsub.f32 %v736, %v737
    %v739 = vand.u32 %v738, 4294901760
    %740 = vmatmul.mubr.f32.gmra.mrb[0].mxu0 %v739
    %v741 = vpop.f32.mrb[0].mxu0
    %v742 = vadd.f32 %v90, %v741
    %v743 = vpop.f32.mrb[0].mxu0
    %744 = vmatprep.mubr.f32.mxu0 0.0
    %v745 = vand.u32 %v652, 4294901760
    %v746 = vsub.f32 %v652, %v745
    %v747 = vand.u32 %v746, 4294901760
    %v748 = vsub.f32 %v746, %v747
    %v749 = vand.u32 %v748, 4294901760
    %750 = vmatmul.mubr.f32.gmra.mrb[0].mxu0 %v749
    %v751 = vpop.f32.mrb[0].mxu0
    %v752 = vadd.f32 %v91, %v751
    %v753 = vpop.f32.mrb[0].mxu0
    %754 = vdwg.mxu0
    %755 = vmatprep.subr.mxu0 0.0
    %v756 = vand.u32 %v655, 4294901760
    %v757 = vsub.f32 %v655, %v756
    %v758 = vand.u32 %v757, 4294901760
    %v759 = vsub.f32 %v757, %v758
    %v760 = vand.u32 %v759, 4294901760
    %761 = vmatpush1.xpose.msra.mxu0 %v760
    %762 = vmatprep.subr.mxu0 0.0
    %v763 = vand.u32 %v658, 4294901760
    %v764 = vsub.f32 %v658, %v763
    %v765 = vand.u32 %v764, 4294901760
    %v766 = vsub.f32 %v764, %v765
    %v767 = vand.u32 %v766, 4294901760
    %768 = vmatpush1.xpose.msra.mxu0 %v767
    %769 = vmatprep.subr.mxu0 0.0
    %v770 = vand.u32 %v661, 4294901760
    %v771 = vsub.f32 %v661, %v770
    %v772 = vand.u32 %v771, 4294901760
    %v773 = vsub.f32 %v771, %v772
    %v774 = vand.u32 %v773, 4294901760
    %775 = vmatpush1.xpose.msra.mxu0 %v774
    %776 = vmatprep.subr.mxu0 0.0
    %v777 = vand.u32 %v664, 4294901760
    %v778 = vsub.f32 %v664, %v777
    %v779 = vand.u32 %v778, 4294901760
    %v780 = vsub.f32 %v778, %v779
    %v781 = vand.u32 %v780, 4294901760
    %782 = vmatpush1.xpose.msra.mxu0 %v781
    %783 = vmatprep.subr.mxu0 0.0
    %784 = vmatpush1.xpose.msra.mxu0 0.0
    %785 = vmatprep.subr.mxu0 0.0
    %786 = vmatpush1.xpose.msra.mxu0 0.0
    %787 = vmatprep.subr.mxu0 0.0
    %788 = vmatpush1.xpose.msra.mxu0 0.0
    %789 = vmatprep.subr.mxu0 0.0
    %790 = vmatpush1.xpose.msra.mxu0 0.0
    %791 = vmatprep.subr.mxu0 0.0
    %792 = vmatpush1.xpose.msra.mxu0 0.0
    %793 = vmatprep.subr.mxu0 0.0
    %794 = vmatpush1.xpose.msra.mxu0 0.0
    %795 = vmatprep.subr.mxu0 0.0
    %796 = vmatpush1.xpose.msra.mxu0 0.0
    %797 = vmatprep.subr.mxu0 0.0
    %798 = vmatpush1.xpose.msra.mxu0 0.0
    %799 = vmatprep.subr.mxu0 0.0
    %800 = vmatpush1.xpose.msra.mxu0 0.0
    %801 = vmatprep.subr.mxu0 0.0
    %802 = vmatpush1.xpose.msra.mxu0 0.0
    %803 = vmatprep.subr.mxu0 0.0
    %804 = vmatpush1.xpose.msra.mxu0 0.0
    %805 = vmatprep.subr.mxu0 0.0
    %806 = vmatpush1.xpose.msra.mxu0 0.0
    %807 = vmatprep.subr.mxu0 0.0
    %808 = vmatpush1.xpose.msra.mxu0 0.0
    %809 = vmatprep.subr.mxu0 0.0
    %810 = vmatpush1.xpose.msra.mxu0 0.0
    %811 = vmatprep.subr.mxu0 0.0
    %812 = vmatpush1.xpose.msra.mxu0 0.0
    %813 = vmatprep.subr.mxu0 0.0
    %814 = vmatpush1.xpose.msra.mxu0 0.0
    %815 = vmatprep.subr.mxu0 0.0
    %816 = vmatpush1.xpose.msra.mxu0 0.0
    %817 = vmatprep.subr.mxu0 0.0
    %818 = vmatpush1.xpose.msra.mxu0 0.0
    %819 = vmatprep.subr.mxu0 0.0
    %820 = vmatpush1.xpose.msra.mxu0 0.0
    %821 = vmatprep.subr.mxu0 0.0
    %822 = vmatpush1.xpose.msra.mxu0 0.0
    %823 = vmatprep.subr.mxu0 0.0
    %824 = vmatpush1.xpose.msra.mxu0 0.0
    %825 = vmatprep.subr.mxu0 0.0
    %826 = vmatpush1.xpose.msra.mxu0 0.0
    %827 = vmatprep.subr.mxu0 0.0
    %828 = vmatpush1.xpose.msra.mxu0 0.0
    %829 = vmatprep.subr.mxu0 0.0
    %830 = vmatpush1.xpose.msra.mxu0 0.0
    %831 = vmatprep.subr.mxu0 0.0
    %832 = vmatpush1.xpose.msra.mxu0 0.0
    %833 = vmatprep.subr.mxu0 0.0
    %834 = vmatpush1.xpose.msra.mxu0 0.0
    %835 = vmatprep.subr.mxu0 0.0
    %836 = vmatpush1.xpose.msra.mxu0 0.0
    %837 = vmatprep.subr.mxu0 0.0
    %838 = vmatpush1.xpose.msra.mxu0 0.0
    %839 = vmatprep.mubr.f32.mxu0 0.0
    %v840 = vand.u32 %v649, 4294901760
    %841 = vmatmul.mubr.f32.gmra.mrb[0].mxu0 %v840
    %v842 = vpop.f32.mrb[0].mxu0
    %v843 = vadd.f32 %v742, %v842
    %v844 = vpop.f32.mrb[0].mxu0
    %845 = vmatprep.mubr.f32.mxu0 0.0
    %v846 = vand.u32 %v652, 4294901760
    %847 = vmatmul.mubr.f32.gmra.mrb[0].mxu0 %v846
    %v848 = vpop.f32.mrb[0].mxu0
    %v849 = vadd.f32 %v752, %v848
    %v850 = vpop.f32.mrb[0].mxu0
    %851 = vdwg.mxu0
    %852 = vmatprep.subr.mxu0 0.0
    %v853 = vand.u32 %v655, 4294901760
    %v854 = vsub.f32 %v655, %v853
    %855 = vmatpush1.xpose.msra.mxu0 %v854
    %856 = vmatprep.subr.mxu0 0.0
    %v857 = vand.u32 %v658, 4294901760
    %v858 = vsub.f32 %v658, %v857
    %859 = vmatpush1.xpose.msra.mxu0 %v858
    %860 = vmatprep.subr.mxu0 0.0
    %v861 = vand.u32 %v661, 4294901760
    %v862 = vsub.f32 %v661, %v861
    %863 = vmatpush1.xpose.msra.mxu0 %v862
    %864 = vmatprep.subr.mxu0 0.0
    %v865 = vand.u32 %v664, 4294901760
    %v866 = vsub.f32 %v664, %v865
    %867 = vmatpush1.xpose.msra.mxu0 %v866
    %868 = vmatprep.subr.mxu0 0.0
    %869 = vmatpush1.xpose.msra.mxu0 0.0
    %870 = vmatprep.subr.mxu0 0.0
    %871 = vmatpush1.xpose.msra.mxu0 0.0
    %872 = vmatprep.subr.mxu0 0.0
    %873 = vmatpush1.xpose.msra.mxu0 0.0
    %874 = vmatprep.subr.mxu0 0.0
    %875 = vmatpush1.xpose.msra.mxu0 0.0
    %876 = vmatprep.subr.mxu0 0.0
    %877 = vmatpush1.xpose.msra.mxu0 0.0
    %878 = vmatprep.subr.mxu0 0.0
    %879 = vmatpush1.xpose.msra.mxu0 0.0
    %880 = vmatprep.subr.mxu0 0.0
    %881 = vmatpush1.xpose.msra.mxu0 0.0
    %882 = vmatprep.subr.mxu0 0.0
    %883 = vmatpush1.xpose.msra.mxu0 0.0
    %884 = vmatprep.subr.mxu0 0.0
    %885 = vmatpush1.xpose.msra.mxu0 0.0
    %886 = vmatprep.subr.mxu0 0.0
    %887 = vmatpush1.xpose.msra.mxu0 0.0
    %888 = vmatprep.subr.mxu0 0.0
    %889 = vmatpush1.xpose.msra.mxu0 0.0
    %890 = vmatprep.subr.mxu0 0.0
    %891 = vmatpush1.xpose.msra.mxu0 0.0
    %892 = vmatprep.subr.mxu0 0.0
    %893 = vmatpush1.xpose.msra.mxu0 0.0
    %894 = vmatprep.subr.mxu0 0.0
    %895 = vmatpush1.xpose.msra.mxu0 0.0
    %896 = vmatprep.subr.mxu0 0.0
    %897 = vmatpush1.xpose.msra.mxu0 0.0
    %898 = vmatprep.subr.mxu0 0.0
    %899 = vmatpush1.xpose.msra.mxu0 0.0
    %900 = vmatprep.subr.mxu0 0.0
    %901 = vmatpush1.xpose.msra.mxu0 0.0
    %902 = vmatprep.subr.mxu0 0.0
    %903 = vmatpush1.xpose.msra.mxu0 0.0
    %904 = vmatprep.subr.mxu0 0.0
    %905 = vmatpush1.xpose.msra.mxu0 0.0
    %906 = vmatprep.subr.mxu0 0.0
    %907 = vmatpush1.xpose.msra.mxu0 0.0
    %908 = vmatprep.subr.mxu0 0.0
    %909 = vmatpush1.xpose.msra.mxu0 0.0
    %910 = vmatprep.subr.mxu0 0.0
    %911 = vmatpush1.xpose.msra.mxu0 0.0
    %912 = vmatprep.subr.mxu0 0.0
    %913 = vmatpush1.xpose.msra.mxu0 0.0
    %914 = vmatprep.subr.mxu0 0.0
    %915 = vmatpush1.xpose.msra.mxu0 0.0
    %916 = vmatprep.subr.mxu0 0.0
    %917 = vmatpush1.xpose.msra.mxu0 0.0
    %918 = vmatprep.subr.mxu0 0.0
    %919 = vmatpush1.xpose.msra.mxu0 0.0
    %920 = vmatprep.subr.mxu0 0.0
    %921 = vmatpush1.xpose.msra.mxu0 0.0
    %922 = vmatprep.subr.mxu0 0.0
    %923 = vmatpush1.xpose.msra.mxu0 0.0
    %924 = vmatprep.mubr.f32.mxu0 0.0
    %v925 = vand.u32 %v649, 4294901760
    %v926 = vsub.f32 %v649, %v925
    %927 = vmatmul.mubr.f32.gmra.mrb[0].mxu0 %v926
    %v928 = vpop.f32.mrb[0].mxu0
    %v929 = vadd.f32 %v843, %v928
    %v930 = vpop.f32.mrb[0].mxu0
    %931 = vmatprep.mubr.f32.mxu0 0.0
    %v932 = vand.u32 %v652, 4294901760
    %v933 = vsub.f32 %v652, %v932
    %934 = vmatmul.mubr.f32.gmra.mrb[0].mxu0 %v933
    %v935 = vpop.f32.mrb[0].mxu0
    %v936 = vadd.f32 %v849, %v935
    %v937 = vpop.f32.mrb[0].mxu0
    %938 = vdwg.mxu0
    %939 = vmatprep.subr.mxu0 0.0
    %v940 = vand.u32 %v655, 4294901760
    %941 = vmatpush1.xpose.msra.mxu0 %v940
    %942 = vmatprep.subr.mxu0 0.0
    %v943 = vand.u32 %v658, 4294901760
    %944 = vmatpush1.xpose.msra.mxu0 %v943
    %945 = vmatprep.subr.mxu0 0.0
    %v946 = vand.u32 %v661, 4294901760
    %947 = vmatpush1.xpose.msra.mxu0 %v946
    %948 = vmatprep.subr.mxu0 0.0
    %v949 = vand.u32 %v664, 4294901760
    %950 = vmatpush1.xpose.msra.mxu0 %v949
    %951 = vmatprep.subr.mxu0 0.0
    %952 = vmatpush1.xpose.msra.mxu0 0.0
    %953 = vmatprep.subr.mxu0 0.0
    %954 = vmatpush1.xpose.msra.mxu0 0.0
    %955 = vmatprep.subr.mxu0 0.0
    %956 = vmatpush1.xpose.msra.mxu0 0.0
    %957 = vmatprep.subr.mxu0 0.0
    %958 = vmatpush1.xpose.msra.mxu0 0.0
    %959 = vmatprep.subr.mxu0 0.0
    %960 = vmatpush1.xpose.msra.mxu0 0.0
    %961 = vmatprep.subr.mxu0 0.0
    %962 = vmatpush1.xpose.msra.mxu0 0.0
    %963 = vmatprep.subr.mxu0 0.0
    %964 = vmatpush1.xpose.msra.mxu0 0.0
    %965 = vmatprep.subr.mxu0 0.0
    %966 = vmatpush1.xpose.msra.mxu0 0.0
    %967 = vmatprep.subr.mxu0 0.0
    %968 = vmatpush1.xpose.msra.mxu0 0.0
    %969 = vmatprep.subr.mxu0 0.0
    %970 = vmatpush1.xpose.msra.mxu0 0.0
    %971 = vmatprep.subr.mxu0 0.0
    %972 = vmatpush1.xpose.msra.mxu0 0.0
    %973 = vmatprep.subr.mxu0 0.0
    %974 = vmatpush1.xpose.msra.mxu0 0.0
    %975 = vmatprep.subr.mxu0 0.0
    %976 = vmatpush1.xpose.msra.mxu0 0.0
    %977 = vmatprep.subr.mxu0 0.0
    %978 = vmatpush1.xpose.msra.mxu0 0.0
    %979 = vmatprep.subr.mxu0 0.0
    %980 = vmatpush1.xpose.msra.mxu0 0.0
    %981 = vmatprep.subr.mxu0 0.0
    %982 = vmatpush1.xpose.msra.mxu0 0.0
    %983 = vmatprep.subr.mxu0 0.0
    %984 = vmatpush1.xpose.msra.mxu0 0.0
    %985 = vmatprep.subr.mxu0 0.0
    %986 = vmatpush1.xpose.msra.mxu0 0.0
    %987 = vmatprep.subr.mxu0 0.0
    %988 = vmatpush1.xpose.msra.mxu0 0.0
    %989 = vmatprep.subr.mxu0 0.0
    %990 = vmatpush1.xpose.msra.mxu0 0.0
    %991 = vmatprep.subr.mxu0 0.0
    %992 = vmatpush1.xpose.msra.mxu0 0.0
    %993 = vmatprep.subr.mxu0 0.0
    %994 = vmatpush1.xpose.msra.mxu0 0.0
    %995 = vmatprep.subr.mxu0 0.0
    %996 = vmatpush1.xpose.msra.mxu0 0.0
    %997 = vmatprep.subr.mxu0 0.0
    %998 = vmatpush1.xpose.msra.mxu0 0.0
    %999 = vmatprep.subr.mxu0 0.0
    %1000 = vmatpush1.xpose.msra.mxu0 0.0
    %1001 = vmatprep.subr.mxu0 0.0
    %1002 = vmatpush1.xpose.msra.mxu0 0.0
    %1003 = vmatprep.subr.mxu0 0.0
    %1004 = vmatpush1.xpose.msra.mxu0 0.0
    %1005 = vmatprep.subr.mxu0 0.0
    %1006 = vmatpush1.xpose.msra.mxu0 0.0
    %1007 = vmatprep.mubr.f32.mxu0 0.0
    %v1008 = vand.u32 %v649, 4294901760
    %v1009 = vsub.f32 %v649, %v1008
    %v1010 = vand.u32 %v1009, 4294901760
    %1011 = vmatmul.mubr.f32.gmra.mrb[0].mxu0 %v1010
    %v1012 = vpop.f32.mrb[0].mxu0
    %v1013 = vadd.f32 %v929, %v1012
    %v1014 = vpop.f32.mrb[0].mxu0
    %1015 = vmatprep.mubr.f32.mxu0 0.0
    %v1016 = vand.u32 %v652, 4294901760
    %v1017 = vsub.f32 %v652, %v1016
    %v1018 = vand.u32 %v1017, 4294901760
    %1019 = vmatmul.mubr.f32.gmra.mrb[0].mxu0 %v1018
    %v1020 = vpop.f32.mrb[0].mxu0
    %v1021 = vadd.f32 %v936, %v1020
    %v1022 = vpop.f32.mrb[0].mxu0
    %1023 = vdwg.mxu0
    %1024 = vmatprep.subr.mxu0 0.0
    %v1025 = vand.u32 %v655, 4294901760
    %v1026 = vsub.f32 %v655, %v1025
    %v1027 = vand.u32 %v1026, 4294901760
    %1028 = vmatpush1.xpose.msra.mxu0 %v1027
    %1029 = vmatprep.subr.mxu0 0.0
    %v1030 = vand.u32 %v658, 4294901760
    %v1031 = vsub.f32 %v658, %v1030
    %v1032 = vand.u32 %v1031, 4294901760
    %1033 = vmatpush1.xpose.msra.mxu0 %v1032
    %1034 = vmatprep.subr.mxu0 0.0
    %v1035 = vand.u32 %v661, 4294901760
    %v1036 = vsub.f32 %v661, %v1035
    %v1037 = vand.u32 %v1036, 4294901760
    %1038 = vmatpush1.xpose.msra.mxu0 %v1037
    %1039 = vmatprep.subr.mxu0 0.0
    %v1040 = vand.u32 %v664, 4294901760
    %v1041 = vsub.f32 %v664, %v1040
    %v1042 = vand.u32 %v1041, 4294901760
    %1043 = vmatpush1.xpose.msra.mxu0 %v1042
    %1044 = vmatprep.subr.mxu0 0.0
    %1045 = vmatpush1.xpose.msra.mxu0 0.0
    %1046 = vmatprep.subr.mxu0 0.0
    %1047 = vmatpush1.xpose.msra.mxu0 0.0
    %1048 = vmatprep.subr.mxu0 0.0
    %1049 = vmatpush1.xpose.msra.mxu0 0.0
    %1050 = vmatprep.subr.mxu0 0.0
    %1051 = vmatpush1.xpose.msra.mxu0 0.0
    %1052 = vmatprep.subr.mxu0 0.0
    %1053 = vmatpush1.xpose.msra.mxu0 0.0
    %1054 = vmatprep.subr.mxu0 0.0
    %1055 = vmatpush1.xpose.msra.mxu0 0.0
    %1056 = vmatprep.subr.mxu0 0.0
    %1057 = vmatpush1.xpose.msra.mxu0 0.0
    %1058 = vmatprep.subr.mxu0 0.0
    %1059 = vmatpush1.xpose.msra.mxu0 0.0
    %1060 = vmatprep.subr.mxu0 0.0
    %1061 = vmatpush1.xpose.msra.mxu0 0.0
    %1062 = vmatprep.subr.mxu0 0.0
    %1063 = vmatpush1.xpose.msra.mxu0 0.0
    %1064 = vmatprep.subr.mxu0 0.0
    %1065 = vmatpush1.xpose.msra.mxu0 0.0
    %1066 = vmatprep.subr.mxu0 0.0
    %1067 = vmatpush1.xpose.msra.mxu0 0.0
    %1068 = vmatprep.subr.mxu0 0.0
    %1069 = vmatpush1.xpose.msra.mxu0 0.0
    %1070 = vmatprep.subr.mxu0 0.0
    %1071 = vmatpush1.xpose.msra.mxu0 0.0
    %1072 = vmatprep.subr.mxu0 0.0
    %1073 = vmatpush1.xpose.msra.mxu0 0.0
    %1074 = vmatprep.subr.mxu0 0.0
    %1075 = vmatpush1.xpose.msra.mxu0 0.0
    %1076 = vmatprep.subr.mxu0 0.0
    %1077 = vmatpush1.xpose.msra.mxu0 0.0
    %1078 = vmatprep.subr.mxu0 0.0
    %1079 = vmatpush1.xpose.msra.mxu0 0.0
    %1080 = vmatprep.subr.mxu0 0.0
    %1081 = vmatpush1.xpose.msra.mxu0 0.0
    %1082 = vmatprep.subr.mxu0 0.0
    %1083 = vmatpush1.xpose.msra.mxu0 0.0
    %1084 = vmatprep.subr.mxu0 0.0
    %1085 = vmatpush1.xpose.msra.mxu0 0.0
    %1086 = vmatprep.subr.mxu0 0.0
    %1087 = vmatpush1.xpose.msra.mxu0 0.0
    %1088 = vmatprep.subr.mxu0 0.0
    %1089 = vmatpush1.xpose.msra.mxu0 0.0
    %1090 = vmatprep.subr.mxu0 0.0
    %1091 = vmatpush1.xpose.msra.mxu0 0.0
    %1092 = vmatprep.subr.mxu0 0.0
    %1093 = vmatpush1.xpose.msra.mxu0 0.0
    %1094 = vmatprep.subr.mxu0 0.0
    %1095 = vmatpush1.xpose.msra.mxu0 0.0
    %1096 = vmatprep.subr.mxu0 0.0
    %1097 = vmatpush1.xpose.msra.mxu0 0.0
    %1098 = vmatprep.subr.mxu0 0.0
    %1099 = vmatpush1.xpose.msra.mxu0 0.0
    %1100 = vmatprep.mubr.f32.mxu0 0.0
    %v1101 = vand.u32 %v649, 4294901760
    %1102 = vmatmul.mubr.f32.gmra.mrb[0].mxu0 %v1101
    %v1103 = vpop.f32.mrb[0].mxu0
    %v1104 = vadd.f32 %v1013, %v1103
    %v1105 = vpop.f32.mrb[0].mxu0
    %1106 = vmatprep.mubr.f32.mxu0 0.0
    %v1107 = vand.u32 %v652, 4294901760
    %1108 = vmatmul.mubr.f32.gmra.mrb[0].mxu0 %v1107
    %v1109 = vpop.f32.mrb[0].mxu0
    %v1110 = vadd.f32 %v1021, %v1109
    %v1111 = vpop.f32.mrb[0].mxu0
    %1112 = vdwg.mxu0
    %1113 = vmatprep.subr.mxu0 0.0
    %v1114 = vand.u32 %v655, 4294901760
    %1115 = vmatpush1.xpose.msra.mxu0 %v1114
    %1116 = vmatprep.subr.mxu0 0.0
    %v1117 = vand.u32 %v658, 4294901760
    %1118 = vmatpush1.xpose.msra.mxu0 %v1117
    %1119 = vmatprep.subr.mxu0 0.0
    %v1120 = vand.u32 %v661, 4294901760
    %1121 = vmatpush1.xpose.msra.mxu0 %v1120
    %1122 = vmatprep.subr.mxu0 0.0
    %v1123 = vand.u32 %v664, 4294901760
    %1124 = vmatpush1.xpose.msra.mxu0 %v1123
    %1125 = vmatprep.subr.mxu0 0.0
    %1126 = vmatpush1.xpose.msra.mxu0 0.0
    %1127 = vmatprep.subr.mxu0 0.0
    %1128 = vmatpush1.xpose.msra.mxu0 0.0
    %1129 = vmatprep.subr.mxu0 0.0
    %1130 = vmatpush1.xpose.msra.mxu0 0.0
    %1131 = vmatprep.subr.mxu0 0.0
    %1132 = vmatpush1.xpose.msra.mxu0 0.0
    %1133 = vmatprep.subr.mxu0 0.0
    %1134 = vmatpush1.xpose.msra.mxu0 0.0
    %1135 = vmatprep.subr.mxu0 0.0
    %1136 = vmatpush1.xpose.msra.mxu0 0.0
    %1137 = vmatprep.subr.mxu0 0.0
    %1138 = vmatpush1.xpose.msra.mxu0 0.0
    %1139 = vmatprep.subr.mxu0 0.0
    %1140 = vmatpush1.xpose.msra.mxu0 0.0
    %1141 = vmatprep.subr.mxu0 0.0
    %1142 = vmatpush1.xpose.msra.mxu0 0.0
    %1143 = vmatprep.subr.mxu0 0.0
    %1144 = vmatpush1.xpose.msra.mxu0 0.0
    %1145 = vmatprep.subr.mxu0 0.0
    %1146 = vmatpush1.xpose.msra.mxu0 0.0
    %1147 = vmatprep.subr.mxu0 0.0
    %1148 = vmatpush1.xpose.msra.mxu0 0.0
    %1149 = vmatprep.subr.mxu0 0.0
    %1150 = vmatpush1.xpose.msra.mxu0 0.0
    %1151 = vmatprep.subr.mxu0 0.0
    %1152 = vmatpush1.xpose.msra.mxu0 0.0
    %1153 = vmatprep.subr.mxu0 0.0
    %1154 = vmatpush1.xpose.msra.mxu0 0.0
    %1155 = vmatprep.subr.mxu0 0.0
    %1156 = vmatpush1.xpose.msra.mxu0 0.0
    %1157 = vmatprep.subr.mxu0 0.0
    %1158 = vmatpush1.xpose.msra.mxu0 0.0
    %1159 = vmatprep.subr.mxu0 0.0
    %1160 = vmatpush1.xpose.msra.mxu0 0.0
    %1161 = vmatprep.subr.mxu0 0.0
    %1162 = vmatpush1.xpose.msra.mxu0 0.0
    %1163 = vmatprep.subr.mxu0 0.0
    %1164 = vmatpush1.xpose.msra.mxu0 0.0
    %1165 = vmatprep.subr.mxu0 0.0
    %1166 = vmatpush1.xpose.msra.mxu0 0.0
    %1167 = vmatprep.subr.mxu0 0.0
    %1168 = vmatpush1.xpose.msra.mxu0 0.0
    %1169 = vmatprep.subr.mxu0 0.0
    %1170 = vmatpush1.xpose.msra.mxu0 0.0
    %1171 = vmatprep.subr.mxu0 0.0
    %1172 = vmatpush1.xpose.msra.mxu0 0.0
    %1173 = vmatprep.subr.mxu0 0.0
    %1174 = vmatpush1.xpose.msra.mxu0 0.0
    %1175 = vmatprep.subr.mxu0 0.0
    %1176 = vmatpush1.xpose.msra.mxu0 0.0
    %1177 = vmatprep.subr.mxu0 0.0
    %1178 = vmatpush1.xpose.msra.mxu0 0.0
    %1179 = vmatprep.subr.mxu0 0.0
    %1180 = vmatpush1.xpose.msra.mxu0 0.0
    %1181 = vmatprep.mubr.f32.mxu0 0.0
    %v1182 = vand.u32 %v649, 4294901760
    %1183 = vmatmul.mubr.f32.gmra.mrb[0].mxu0 %v1182
    %v1184 = vpop.f32.mrb[0].mxu0
    %v1185 = vadd.f32 %v1104, %v1184
    %v1186 = vpop.f32.mrb[0].mxu0
    %1187 = vmatprep.mubr.f32.mxu0 0.0
    %v1188 = vand.u32 %v652, 4294901760
    %1189 = vmatmul.mubr.f32.gmra.mrb[0].mxu0 %v1188
    %v1190 = vpop.f32.mrb[0].mxu0
    %v1191 = vadd.f32 %v1110, %v1190
    %v1192 = vpop.f32.mrb[0].mxu0
    %1193 = vdwg.mxu0
    %vm1194 = vcmask 261120
    %v1195 = vsel %vm1194, %v639, -inf
    %1196 = vmax.xlane.f32.xlu0 %v1195
    %v1197 = vpop.xlane.xlu0 %1196
    %v1198 = vsel %vm1194, %v645, -inf
    %1199 = vmax.xlane.f32.xlu0 %v1198
    %v1200 = vpop.xlane.xlu0 %1199
    %v1201 = vsel %vm1194, %v1185, -inf
    %1202 = vmax.xlane.f32.xlu0 %v1201
    %v1203 = vpop.xlane.xlu0 %1202
    %v1204 = vsel %vm1194, %v1191, -inf
    %1205 = vmax.xlane.f32.xlu0 %v1204
    %v1206 = vpop.xlane.xlu0 %1205
    %v1207 = vsub.f32 %v639, %v1197
    %v1208 = vsub.f32 %v645, %v1200
    %v1209 = vsub.f32 %v1185, %v1203
    %v1210 = vsub.f32 %v1191, %v1206
    %v1211 = vmul.f32 %v1207, 1.442695
    %v1212 = vpow.pop %v1211
    %v1213 = vmul.f32 %v1208, 1.442695
    %v1214 = vpow.pop %v1213
    %v1215 = vmul.f32 %v1209, 1.442695
    %v1216 = vpow.pop %v1215
    %v1217 = vmul.f32 %v1210, 1.442695
    %v1218 = vpow.pop %v1217
    %v1219 = vsel %vm1194, %v1212, 0.0
    %1220 = vadd.xlane.f32.xlu0 %v1219
    %v1221 = vpop.xlane.xlu0 %1220
    %v1222 = vsel %vm1194, %v1214, 0.0
    %1223 = vadd.xlane.f32.xlu0 %v1222
    %v1224 = vpop.xlane.xlu0 %1223
    %v1225 = vsel %vm1194, %v1216, 0.0
    %1226 = vadd.xlane.f32.xlu0 %v1225
    %v1227 = vpop.xlane.xlu0 %1226
    %v1228 = vsel %vm1194, %v1218, 0.0
    %1229 = vadd.xlane.f32.xlu0 %v1228
    %v1230 = vpop.xlane.xlu0 %1229
    %v1231 = vrcp.pop %v1221
    %v1232 = vrcp.pop %v1224
    %v1233 = vrcp.pop %v1227
    %v1234 = vrcp.pop %v1230
    %v1235 = vmul.f32 %v1221, %v1231
    %v1236 = vmul.f32 %v1224, %v1232
    %v1237 = vmul.f32 %v1227, %v1233
    %v1238 = vmul.f32 %v1230, %v1234
    %v1239 = vsub.f32 2.0, %v1235
    %v1240 = vsub.f32 2.0, %v1236
    %v1241 = vsub.f32 2.0, %v1237
    %v1242 = vsub.f32 2.0, %v1238
    %v1243 = vmul.f32 %v1231, %v1239
    %v1244 = vmul.f32 %v1232, %v1240
    %v1245 = vmul.f32 %v1233, %v1241
    %v1246 = vmul.f32 %v1234, %v1242
    %v1248 = vsel %vm1194, %v1212, 0
    %v1251 = vsel %vm1194, %v1214, 0
    %1253 = vmatprep.subr.mxu0 0.0
    %v1254 = vand.u32 %v92, 4294901760
    %1255 = vmatpush1.msra.mxu0 %v1254
    %1256 = vmatprep.subr.mxu0 0.0
    %v1257 = vand.u32 %v93, 4294901760
    %1258 = vmatpush1.msra.mxu0 %v1257
    %1259 = vmatprep.subr.mxu0 0.0
    %v1260 = vand.u32 %v94, 4294901760
    %1261 = vmatpush1.msra.mxu0 %v1260
    %1262 = vmatprep.subr.mxu0 0.0
    %v1263 = vand.u32 %v95, 4294901760
    %1264 = vmatpush1.msra.mxu0 %v1263
    %1265 = vmatprep.subr.mxu0 0.0
    %1266 = vmatpush1.msra.mxu0 0.0
    %1267 = vmatprep.subr.mxu0 0.0
    %1268 = vmatpush1.msra.mxu0 0.0
    %1269 = vmatprep.subr.mxu0 0.0
    %1270 = vmatpush1.msra.mxu0 0.0
    %1271 = vmatprep.subr.mxu0 0.0
    %1272 = vmatpush1.msra.mxu0 0.0
    %1273 = vmatprep.subr.mxu0 0.0
    %1274 = vmatpush1.msra.mxu0 0.0
    %1275 = vmatprep.subr.mxu0 0.0
    %1276 = vmatpush1.msra.mxu0 0.0
    %1277 = vmatprep.subr.mxu0 0.0
    %1278 = vmatpush1.msra.mxu0 0.0
    %1279 = vmatprep.subr.mxu0 0.0
    %1280 = vmatpush1.msra.mxu0 0.0
    %1281 = vmatprep.subr.mxu0 0.0
    %1282 = vmatpush1.msra.mxu0 0.0
    %1283 = vmatprep.subr.mxu0 0.0
    %1284 = vmatpush1.msra.mxu0 0.0
    %1285 = vmatprep.subr.mxu0 0.0
    %1286 = vmatpush1.msra.mxu0 0.0
    %1287 = vmatprep.subr.mxu0 0.0
    %1288 = vmatpush1.msra.mxu0 0.0
    %1289 = vmatprep.subr.mxu0 0.0
    %1290 = vmatpush1.msra.mxu0 0.0
    %1291 = vmatprep.subr.mxu0 0.0
    %1292 = vmatpush1.msra.mxu0 0.0
    %1293 = vmatprep.subr.mxu0 0.0
    %1294 = vmatpush1.msra.mxu0 0.0
    %1295 = vmatprep.subr.mxu0 0.0
    %1296 = vmatpush1.msra.mxu0 0.0
    %1297 = vmatprep.subr.mxu0 0.0
    %1298 = vmatpush1.msra.mxu0 0.0
    %1299 = vmatprep.subr.mxu0 0.0
    %1300 = vmatpush1.msra.mxu0 0.0
    %1301 = vmatprep.subr.mxu0 0.0
    %1302 = vmatpush1.msra.mxu0 0.0
    %1303 = vmatprep.subr.mxu0 0.0
    %1304 = vmatpush1.msra.mxu0 0.0
    %1305 = vmatprep.subr.mxu0 0.0
    %1306 = vmatpush1.msra.mxu0 0.0
    %1307 = vmatprep.subr.mxu0 0.0
    %1308 = vmatpush1.msra.mxu0 0.0
    %1309 = vmatprep.subr.mxu0 0.0
    %1310 = vmatpush1.msra.mxu0 0.0
    %1311 = vmatprep.subr.mxu0 0.0
    %1312 = vmatpush1.msra.mxu0 0.0
    %1313 = vmatprep.subr.mxu0 0.0
    %1314 = vmatpush1.msra.mxu0 0.0
    %1315 = vmatprep.subr.mxu0 0.0
    %1316 = vmatpush1.msra.mxu0 0.0
    %1317 = vmatprep.subr.mxu0 0.0
    %1318 = vmatpush1.msra.mxu0 0.0
    %1319 = vmatprep.subr.mxu0 0.0
    %1320 = vmatpush1.msra.mxu0 0.0
    %1321 = vmatprep.mubr.f32.mxu0 0.0
    %v1322 = vand.u32 %v1248, 4294901760
    %v1323 = vsub.f32 %v1248, %v1322
    %v1324 = vand.u32 %v1323, 4294901760
    %v1325 = vsub.f32 %v1323, %v1324
    %v1326 = vand.u32 %v1325, 4294901760
    %1327 = vmatmul.mubr.f32.gmra.mrb[0].mxu0 %v1326
    %v1328 = vpop.f32.mrb[0].mxu0
    %v1329 = vadd.f32 0.0, %v1328
    %v1330 = vpop.f32.mrb[0].mxu0
    %1331 = vmatprep.mubr.f32.mxu0 0.0
    %v1332 = vand.u32 %v1251, 4294901760
    %v1333 = vsub.f32 %v1251, %v1332
    %v1334 = vand.u32 %v1333, 4294901760
    %v1335 = vsub.f32 %v1333, %v1334
    %v1336 = vand.u32 %v1335, 4294901760
    %1337 = vmatmul.mubr.f32.gmra.mrb[0].mxu0 %v1336
    %v1338 = vpop.f32.mrb[0].mxu0
    %v1339 = vadd.f32 0.0, %v1338
    %v1340 = vpop.f32.mrb[0].mxu0
    %1341 = vdwg.mxu0
    %1342 = vmatprep.subr.mxu0 0.0
    %v1343 = vand.u32 %v92, 4294901760
    %v1344 = vsub.f32 %v92, %v1343
    %v1345 = vand.u32 %v1344, 4294901760
    %v1346 = vsub.f32 %v1344, %v1345
    %v1347 = vand.u32 %v1346, 4294901760
    %1348 = vmatpush1.msra.mxu0 %v1347
    %1349 = vmatprep.subr.mxu0 0.0
    %v1350 = vand.u32 %v93, 4294901760
    %v1351 = vsub.f32 %v93, %v1350
    %v1352 = vand.u32 %v1351, 4294901760
    %v1353 = vsub.f32 %v1351, %v1352
    %v1354 = vand.u32 %v1353, 4294901760
    %1355 = vmatpush1.msra.mxu0 %v1354
    %1356 = vmatprep.subr.mxu0 0.0
    %v1357 = vand.u32 %v94, 4294901760
    %v1358 = vsub.f32 %v94, %v1357
    %v1359 = vand.u32 %v1358, 4294901760
    %v1360 = vsub.f32 %v1358, %v1359
    %v1361 = vand.u32 %v1360, 4294901760
    %1362 = vmatpush1.msra.mxu0 %v1361
    %1363 = vmatprep.subr.mxu0 0.0
    %v1364 = vand.u32 %v95, 4294901760
    %v1365 = vsub.f32 %v95, %v1364
    %v1366 = vand.u32 %v1365, 4294901760
    %v1367 = vsub.f32 %v1365, %v1366
    %v1368 = vand.u32 %v1367, 4294901760
    %1369 = vmatpush1.msra.mxu0 %v1368
    %1370 = vmatprep.subr.mxu0 0.0
    %1371 = vmatpush1.msra.mxu0 0.0
    %1372 = vmatprep.subr.mxu0 0.0
    %1373 = vmatpush1.msra.mxu0 0.0
    %1374 = vmatprep.subr.mxu0 0.0
    %1375 = vmatpush1.msra.mxu0 0.0
    %1376 = vmatprep.subr.mxu0 0.0
    %1377 = vmatpush1.msra.mxu0 0.0
    %1378 = vmatprep.subr.mxu0 0.0
    %1379 = vmatpush1.msra.mxu0 0.0
    %1380 = vmatprep.subr.mxu0 0.0
    %1381 = vmatpush1.msra.mxu0 0.0
    %1382 = vmatprep.subr.mxu0 0.0
    %1383 = vmatpush1.msra.mxu0 0.0
    %1384 = vmatprep.subr.mxu0 0.0
    %1385 = vmatpush1.msra.mxu0 0.0
    %1386 = vmatprep.subr.mxu0 0.0
    %1387 = vmatpush1.msra.mxu0 0.0
    %1388 = vmatprep.subr.mxu0 0.0
    %1389 = vmatpush1.msra.mxu0 0.0
    %1390 = vmatprep.subr.mxu0 0.0
    %1391 = vmatpush1.msra.mxu0 0.0
    %1392 = vmatprep.subr.mxu0 0.0
    %1393 = vmatpush1.msra.mxu0 0.0
    %1394 = vmatprep.subr.mxu0 0.0
    %1395 = vmatpush1.msra.mxu0 0.0
    %1396 = vmatprep.subr.mxu0 0.0
    %1397 = vmatpush1.msra.mxu0 0.0
    %1398 = vmatprep.subr.mxu0 0.0
    %1399 = vmatpush1.msra.mxu0 0.0
    %1400 = vmatprep.subr.mxu0 0.0
    %1401 = vmatpush1.msra.mxu0 0.0
    %1402 = vmatprep.subr.mxu0 0.0
    %1403 = vmatpush1.msra.mxu0 0.0
    %1404 = vmatprep.subr.mxu0 0.0
    %1405 = vmatpush1.msra.mxu0 0.0
    %1406 = vmatprep.subr.mxu0 0.0
    %1407 = vmatpush1.msra.mxu0 0.0
    %1408 = vmatprep.subr.mxu0 0.0
    %1409 = vmatpush1.msra.mxu0 0.0
    %1410 = vmatprep.subr.mxu0 0.0
    %1411 = vmatpush1.msra.mxu0 0.0
    %1412 = vmatprep.subr.mxu0 0.0
    %1413 = vmatpush1.msra.mxu0 0.0
    %1414 = vmatprep.subr.mxu0 0.0
    %1415 = vmatpush1.msra.mxu0 0.0
    %1416 = vmatprep.subr.mxu0 0.0
    %1417 = vmatpush1.msra.mxu0 0.0
    %1418 = vmatprep.subr.mxu0 0.0
    %1419 = vmatpush1.msra.mxu0 0.0
    %1420 = vmatprep.subr.mxu0 0.0
    %1421 = vmatpush1.msra.mxu0 0.0
    %1422 = vmatprep.subr.mxu0 0.0
    %1423 = vmatpush1.msra.mxu0 0.0
    %1424 = vmatprep.subr.mxu0 0.0
    %1425 = vmatpush1.msra.mxu0 0.0
    %1426 = vmatprep.mubr.f32.mxu0 0.0
    %v1427 = vand.u32 %v1248, 4294901760
    %1428 = vmatmul.mubr.f32.gmra.mrb[0].mxu0 %v1427
    %v1429 = vpop.f32.mrb[0].mxu0
    %v1430 = vadd.f32 %v1329, %v1429
    %v1431 = vpop.f32.mrb[0].mxu0
    %1432 = vmatprep.mubr.f32.mxu0 0.0
    %v1433 = vand.u32 %v1251, 4294901760
    %1434 = vmatmul.mubr.f32.gmra.mrb[0].mxu0 %v1433
    %v1435 = vpop.f32.mrb[0].mxu0
    %v1436 = vadd.f32 %v1339, %v1435
    %v1437 = vpop.f32.mrb[0].mxu0
    %1438 = vdwg.mxu0
    %1439 = vmatprep.subr.mxu0 0.0
    %v1440 = vand.u32 %v92, 4294901760
    %v1441 = vsub.f32 %v92, %v1440
    %1442 = vmatpush1.msra.mxu0 %v1441
    %1443 = vmatprep.subr.mxu0 0.0
    %v1444 = vand.u32 %v93, 4294901760
    %v1445 = vsub.f32 %v93, %v1444
    %1446 = vmatpush1.msra.mxu0 %v1445
    %1447 = vmatprep.subr.mxu0 0.0
    %v1448 = vand.u32 %v94, 4294901760
    %v1449 = vsub.f32 %v94, %v1448
    %1450 = vmatpush1.msra.mxu0 %v1449
    %1451 = vmatprep.subr.mxu0 0.0
    %v1452 = vand.u32 %v95, 4294901760
    %v1453 = vsub.f32 %v95, %v1452
    %1454 = vmatpush1.msra.mxu0 %v1453
    %1455 = vmatprep.subr.mxu0 0.0
    %1456 = vmatpush1.msra.mxu0 0.0
    %1457 = vmatprep.subr.mxu0 0.0
    %1458 = vmatpush1.msra.mxu0 0.0
    %1459 = vmatprep.subr.mxu0 0.0
    %1460 = vmatpush1.msra.mxu0 0.0
    %1461 = vmatprep.subr.mxu0 0.0
    %1462 = vmatpush1.msra.mxu0 0.0
    %1463 = vmatprep.subr.mxu0 0.0
    %1464 = vmatpush1.msra.mxu0 0.0
    %1465 = vmatprep.subr.mxu0 0.0
    %1466 = vmatpush1.msra.mxu0 0.0
    %1467 = vmatprep.subr.mxu0 0.0
    %1468 = vmatpush1.msra.mxu0 0.0
    %1469 = vmatprep.subr.mxu0 0.0
    %1470 = vmatpush1.msra.mxu0 0.0
    %1471 = vmatprep.subr.mxu0 0.0
    %1472 = vmatpush1.msra.mxu0 0.0
    %1473 = vmatprep.subr.mxu0 0.0
    %1474 = vmatpush1.msra.mxu0 0.0
    %1475 = vmatprep.subr.mxu0 0.0
    %1476 = vmatpush1.msra.mxu0 0.0
    %1477 = vmatprep.subr.mxu0 0.0
    %1478 = vmatpush1.msra.mxu0 0.0
    %1479 = vmatprep.subr.mxu0 0.0
    %1480 = vmatpush1.msra.mxu0 0.0
    %1481 = vmatprep.subr.mxu0 0.0
    %1482 = vmatpush1.msra.mxu0 0.0
    %1483 = vmatprep.subr.mxu0 0.0
    %1484 = vmatpush1.msra.mxu0 0.0
    %1485 = vmatprep.subr.mxu0 0.0
    %1486 = vmatpush1.msra.mxu0 0.0
    %1487 = vmatprep.subr.mxu0 0.0
    %1488 = vmatpush1.msra.mxu0 0.0
    %1489 = vmatprep.subr.mxu0 0.0
    %1490 = vmatpush1.msra.mxu0 0.0
    %1491 = vmatprep.subr.mxu0 0.0
    %1492 = vmatpush1.msra.mxu0 0.0
    %1493 = vmatprep.subr.mxu0 0.0
    %1494 = vmatpush1.msra.mxu0 0.0
    %1495 = vmatprep.subr.mxu0 0.0
    %1496 = vmatpush1.msra.mxu0 0.0
    %1497 = vmatprep.subr.mxu0 0.0
    %1498 = vmatpush1.msra.mxu0 0.0
    %1499 = vmatprep.subr.mxu0 0.0
    %1500 = vmatpush1.msra.mxu0 0.0
    %1501 = vmatprep.subr.mxu0 0.0
    %1502 = vmatpush1.msra.mxu0 0.0
    %1503 = vmatprep.subr.mxu0 0.0
    %1504 = vmatpush1.msra.mxu0 0.0
    %1505 = vmatprep.subr.mxu0 0.0
    %1506 = vmatpush1.msra.mxu0 0.0
    %1507 = vmatprep.subr.mxu0 0.0
    %1508 = vmatpush1.msra.mxu0 0.0
    %1509 = vmatprep.subr.mxu0 0.0
    %1510 = vmatpush1.msra.mxu0 0.0
    %1511 = vmatprep.mubr.f32.mxu0 0.0
    %v1512 = vand.u32 %v1248, 4294901760
    %v1513 = vsub.f32 %v1248, %v1512
    %1514 = vmatmul.mubr.f32.gmra.mrb[0].mxu0 %v1513
    %v1515 = vpop.f32.mrb[0].mxu0
    %v1516 = vadd.f32 %v1430, %v1515
    %v1517 = vpop.f32.mrb[0].mxu0
    %1518 = vmatprep.mubr.f32.mxu0 0.0
    %v1519 = vand.u32 %v1251, 4294901760
    %v1520 = vsub.f32 %v1251, %v1519
    %1521 = vmatmul.mubr.f32.gmra.mrb[0].mxu0 %v1520
    %v1522 = vpop.f32.mrb[0].mxu0
    %v1523 = vadd.f32 %v1436, %v1522
    %v1524 = vpop.f32.mrb[0].mxu0
    %1525 = vdwg.mxu0
    %1526 = vmatprep.subr.mxu0 0.0
    %v1527 = vand.u32 %v92, 4294901760
    %1528 = vmatpush1.msra.mxu0 %v1527
    %1529 = vmatprep.subr.mxu0 0.0
    %v1530 = vand.u32 %v93, 4294901760
    %1531 = vmatpush1.msra.mxu0 %v1530
    %1532 = vmatprep.subr.mxu0 0.0
    %v1533 = vand.u32 %v94, 4294901760
    %1534 = vmatpush1.msra.mxu0 %v1533
    %1535 = vmatprep.subr.mxu0 0.0
    %v1536 = vand.u32 %v95, 4294901760
    %1537 = vmatpush1.msra.mxu0 %v1536
    %1538 = vmatprep.subr.mxu0 0.0
    %1539 = vmatpush1.msra.mxu0 0.0
    %1540 = vmatprep.subr.mxu0 0.0
    %1541 = vmatpush1.msra.mxu0 0.0
    %1542 = vmatprep.subr.mxu0 0.0
    %1543 = vmatpush1.msra.mxu0 0.0
    %1544 = vmatprep.subr.mxu0 0.0
    %1545 = vmatpush1.msra.mxu0 0.0
    %1546 = vmatprep.subr.mxu0 0.0
    %1547 = vmatpush1.msra.mxu0 0.0
    %1548 = vmatprep.subr.mxu0 0.0
    %1549 = vmatpush1.msra.mxu0 0.0
    %1550 = vmatprep.subr.mxu0 0.0
    %1551 = vmatpush1.msra.mxu0 0.0
    %1552 = vmatprep.subr.mxu0 0.0
    %1553 = vmatpush1.msra.mxu0 0.0
    %1554 = vmatprep.subr.mxu0 0.0
    %1555 = vmatpush1.msra.mxu0 0.0
    %1556 = vmatprep.subr.mxu0 0.0
    %1557 = vmatpush1.msra.mxu0 0.0
    %1558 = vmatprep.subr.mxu0 0.0
    %1559 = vmatpush1.msra.mxu0 0.0
    %1560 = vmatprep.subr.mxu0 0.0
    %1561 = vmatpush1.msra.mxu0 0.0
    %1562 = vmatprep.subr.mxu0 0.0
    %1563 = vmatpush1.msra.mxu0 0.0
    %1564 = vmatprep.subr.mxu0 0.0
    %1565 = vmatpush1.msra.mxu0 0.0
    %1566 = vmatprep.subr.mxu0 0.0
    %1567 = vmatpush1.msra.mxu0 0.0
    %1568 = vmatprep.subr.mxu0 0.0
    %1569 = vmatpush1.msra.mxu0 0.0
    %1570 = vmatprep.subr.mxu0 0.0
    %1571 = vmatpush1.msra.mxu0 0.0
    %1572 = vmatprep.subr.mxu0 0.0
    %1573 = vmatpush1.msra.mxu0 0.0
    %1574 = vmatprep.subr.mxu0 0.0
    %1575 = vmatpush1.msra.mxu0 0.0
    %1576 = vmatprep.subr.mxu0 0.0
    %1577 = vmatpush1.msra.mxu0 0.0
    %1578 = vmatprep.subr.mxu0 0.0
    %1579 = vmatpush1.msra.mxu0 0.0
    %1580 = vmatprep.subr.mxu0 0.0
    %1581 = vmatpush1.msra.mxu0 0.0
    %1582 = vmatprep.subr.mxu0 0.0
    %1583 = vmatpush1.msra.mxu0 0.0
    %1584 = vmatprep.subr.mxu0 0.0
    %1585 = vmatpush1.msra.mxu0 0.0
    %1586 = vmatprep.subr.mxu0 0.0
    %1587 = vmatpush1.msra.mxu0 0.0
    %1588 = vmatprep.subr.mxu0 0.0
    %1589 = vmatpush1.msra.mxu0 0.0
    %1590 = vmatprep.subr.mxu0 0.0
    %1591 = vmatpush1.msra.mxu0 0.0
    %1592 = vmatprep.subr.mxu0 0.0
    %1593 = vmatpush1.msra.mxu0 0.0
    %1594 = vmatprep.mubr.f32.mxu0 0.0
    %v1595 = vand.u32 %v1248, 4294901760
    %v1596 = vsub.f32 %v1248, %v1595
    %v1597 = vand.u32 %v1596, 4294901760
    %1598 = vmatmul.mubr.f32.gmra.mrb[0].mxu0 %v1597
    %v1599 = vpop.f32.mrb[0].mxu0
    %v1600 = vadd.f32 %v1516, %v1599
    %v1601 = vpop.f32.mrb[0].mxu0
    %1602 = vmatprep.mubr.f32.mxu0 0.0
    %v1603 = vand.u32 %v1251, 4294901760
    %v1604 = vsub.f32 %v1251, %v1603
    %v1605 = vand.u32 %v1604, 4294901760
    %1606 = vmatmul.mubr.f32.gmra.mrb[0].mxu0 %v1605
    %v1607 = vpop.f32.mrb[0].mxu0
    %v1608 = vadd.f32 %v1523, %v1607
    %v1609 = vpop.f32.mrb[0].mxu0
    %1610 = vdwg.mxu0
    %1611 = vmatprep.subr.mxu0 0.0
    %v1612 = vand.u32 %v92, 4294901760
    %v1613 = vsub.f32 %v92, %v1612
    %v1614 = vand.u32 %v1613, 4294901760
    %1615 = vmatpush1.msra.mxu0 %v1614
    %1616 = vmatprep.subr.mxu0 0.0
    %v1617 = vand.u32 %v93, 4294901760
    %v1618 = vsub.f32 %v93, %v1617
    %v1619 = vand.u32 %v1618, 4294901760
    %1620 = vmatpush1.msra.mxu0 %v1619
    %1621 = vmatprep.subr.mxu0 0.0
    %v1622 = vand.u32 %v94, 4294901760
    %v1623 = vsub.f32 %v94, %v1622
    %v1624 = vand.u32 %v1623, 4294901760
    %1625 = vmatpush1.msra.mxu0 %v1624
    %1626 = vmatprep.subr.mxu0 0.0
    %v1627 = vand.u32 %v95, 4294901760
    %v1628 = vsub.f32 %v95, %v1627
    %v1629 = vand.u32 %v1628, 4294901760
    %1630 = vmatpush1.msra.mxu0 %v1629
    %1631 = vmatprep.subr.mxu0 0.0
    %1632 = vmatpush1.msra.mxu0 0.0
    %1633 = vmatprep.subr.mxu0 0.0
    %1634 = vmatpush1.msra.mxu0 0.0
    %1635 = vmatprep.subr.mxu0 0.0
    %1636 = vmatpush1.msra.mxu0 0.0
    %1637 = vmatprep.subr.mxu0 0.0
    %1638 = vmatpush1.msra.mxu0 0.0
    %1639 = vmatprep.subr.mxu0 0.0
    %1640 = vmatpush1.msra.mxu0 0.0
    %1641 = vmatprep.subr.mxu0 0.0
    %1642 = vmatpush1.msra.mxu0 0.0
    %1643 = vmatprep.subr.mxu0 0.0
    %1644 = vmatpush1.msra.mxu0 0.0
    %1645 = vmatprep.subr.mxu0 0.0
    %1646 = vmatpush1.msra.mxu0 0.0
    %1647 = vmatprep.subr.mxu0 0.0
    %1648 = vmatpush1.msra.mxu0 0.0
    %1649 = vmatprep.subr.mxu0 0.0
    %1650 = vmatpush1.msra.mxu0 0.0
    %1651 = vmatprep.subr.mxu0 0.0
    %1652 = vmatpush1.msra.mxu0 0.0
    %1653 = vmatprep.subr.mxu0 0.0
    %1654 = vmatpush1.msra.mxu0 0.0
    %1655 = vmatprep.subr.mxu0 0.0
    %1656 = vmatpush1.msra.mxu0 0.0
    %1657 = vmatprep.subr.mxu0 0.0
    %1658 = vmatpush1.msra.mxu0 0.0
    %1659 = vmatprep.subr.mxu0 0.0
    %1660 = vmatpush1.msra.mxu0 0.0
    %1661 = vmatprep.subr.mxu0 0.0
    %1662 = vmatpush1.msra.mxu0 0.0
    %1663 = vmatprep.subr.mxu0 0.0
    %1664 = vmatpush1.msra.mxu0 0.0
    %1665 = vmatprep.subr.mxu0 0.0
    %1666 = vmatpush1.msra.mxu0 0.0
    %1667 = vmatprep.subr.mxu0 0.0
    %1668 = vmatpush1.msra.mxu0 0.0
    %1669 = vmatprep.subr.mxu0 0.0
    %1670 = vmatpush1.msra.mxu0 0.0
    %1671 = vmatprep.subr.mxu0 0.0
    %1672 = vmatpush1.msra.mxu0 0.0
    %1673 = vmatprep.subr.mxu0 0.0
    %1674 = vmatpush1.msra.mxu0 0.0
    %1675 = vmatprep.subr.mxu0 0.0
    %1676 = vmatpush1.msra.mxu0 0.0
    %1677 = vmatprep.subr.mxu0 0.0
    %1678 = vmatpush1.msra.mxu0 0.0
    %1679 = vmatprep.subr.mxu0 0.0
    %1680 = vmatpush1.msra.mxu0 0.0
    %1681 = vmatprep.subr.mxu0 0.0
    %1682 = vmatpush1.msra.mxu0 0.0
    %1683 = vmatprep.subr.mxu0 0.0
    %1684 = vmatpush1.msra.mxu0 0.0
    %1685 = vmatprep.subr.mxu0 0.0
    %1686 = vmatpush1.msra.mxu0 0.0
    %1687 = vmatprep.mubr.f32.mxu0 0.0
    %v1688 = vand.u32 %v1248, 4294901760
    %1689 = vmatmul.mubr.f32.gmra.mrb[0].mxu0 %v1688
    %v1690 = vpop.f32.mrb[0].mxu0
    %v1691 = vadd.f32 %v1600, %v1690
    %v1692 = vpop.f32.mrb[0].mxu0
    %1693 = vmatprep.mubr.f32.mxu0 0.0
    %v1694 = vand.u32 %v1251, 4294901760
    %1695 = vmatmul.mubr.f32.gmra.mrb[0].mxu0 %v1694
    %v1696 = vpop.f32.mrb[0].mxu0
    %v1697 = vadd.f32 %v1608, %v1696
    %v1698 = vpop.f32.mrb[0].mxu0
    %1699 = vdwg.mxu0
    %1700 = vmatprep.subr.mxu0 0.0
    %v1701 = vand.u32 %v92, 4294901760
    %1702 = vmatpush1.msra.mxu0 %v1701
    %1703 = vmatprep.subr.mxu0 0.0
    %v1704 = vand.u32 %v93, 4294901760
    %1705 = vmatpush1.msra.mxu0 %v1704
    %1706 = vmatprep.subr.mxu0 0.0
    %v1707 = vand.u32 %v94, 4294901760
    %1708 = vmatpush1.msra.mxu0 %v1707
    %1709 = vmatprep.subr.mxu0 0.0
    %v1710 = vand.u32 %v95, 4294901760
    %1711 = vmatpush1.msra.mxu0 %v1710
    %1712 = vmatprep.subr.mxu0 0.0
    %1713 = vmatpush1.msra.mxu0 0.0
    %1714 = vmatprep.subr.mxu0 0.0
    %1715 = vmatpush1.msra.mxu0 0.0
    %1716 = vmatprep.subr.mxu0 0.0
    %1717 = vmatpush1.msra.mxu0 0.0
    %1718 = vmatprep.subr.mxu0 0.0
    %1719 = vmatpush1.msra.mxu0 0.0
    %1720 = vmatprep.subr.mxu0 0.0
    %1721 = vmatpush1.msra.mxu0 0.0
    %1722 = vmatprep.subr.mxu0 0.0
    %1723 = vmatpush1.msra.mxu0 0.0
    %1724 = vmatprep.subr.mxu0 0.0
    %1725 = vmatpush1.msra.mxu0 0.0
    %1726 = vmatprep.subr.mxu0 0.0
    %1727 = vmatpush1.msra.mxu0 0.0
    %1728 = vmatprep.subr.mxu0 0.0
    %1729 = vmatpush1.msra.mxu0 0.0
    %1730 = vmatprep.subr.mxu0 0.0
    %1731 = vmatpush1.msra.mxu0 0.0
    %1732 = vmatprep.subr.mxu0 0.0
    %1733 = vmatpush1.msra.mxu0 0.0
    %1734 = vmatprep.subr.mxu0 0.0
    %1735 = vmatpush1.msra.mxu0 0.0
    %1736 = vmatprep.subr.mxu0 0.0
    %1737 = vmatpush1.msra.mxu0 0.0
    %1738 = vmatprep.subr.mxu0 0.0
    %1739 = vmatpush1.msra.mxu0 0.0
    %1740 = vmatprep.subr.mxu0 0.0
    %1741 = vmatpush1.msra.mxu0 0.0
    %1742 = vmatprep.subr.mxu0 0.0
    %1743 = vmatpush1.msra.mxu0 0.0
    %1744 = vmatprep.subr.mxu0 0.0
    %1745 = vmatpush1.msra.mxu0 0.0
    %1746 = vmatprep.subr.mxu0 0.0
    %1747 = vmatpush1.msra.mxu0 0.0
    %1748 = vmatprep.subr.mxu0 0.0
    %1749 = vmatpush1.msra.mxu0 0.0
    %1750 = vmatprep.subr.mxu0 0.0
    %1751 = vmatpush1.msra.mxu0 0.0
    %1752 = vmatprep.subr.mxu0 0.0
    %1753 = vmatpush1.msra.mxu0 0.0
    %1754 = vmatprep.subr.mxu0 0.0
    %1755 = vmatpush1.msra.mxu0 0.0
    %1756 = vmatprep.subr.mxu0 0.0
    %1757 = vmatpush1.msra.mxu0 0.0
    %1758 = vmatprep.subr.mxu0 0.0
    %1759 = vmatpush1.msra.mxu0 0.0
    %1760 = vmatprep.subr.mxu0 0.0
    %1761 = vmatpush1.msra.mxu0 0.0
    %1762 = vmatprep.subr.mxu0 0.0
    %1763 = vmatpush1.msra.mxu0 0.0
    %1764 = vmatprep.subr.mxu0 0.0
    %1765 = vmatpush1.msra.mxu0 0.0
    %1766 = vmatprep.subr.mxu0 0.0
    %1767 = vmatpush1.msra.mxu0 0.0
    %1768 = vmatprep.mubr.f32.mxu0 0.0
    %v1769 = vand.u32 %v1248, 4294901760
    %1770 = vmatmul.mubr.f32.gmra.mrb[0].mxu0 %v1769
    %v1771 = vpop.f32.mrb[0].mxu0
    %v1772 = vadd.f32 %v1691, %v1771
    %v1773 = vpop.f32.mrb[0].mxu0
    %1774 = vmatprep.mubr.f32.mxu0 0.0
    %v1775 = vand.u32 %v1251, 4294901760
    %1776 = vmatmul.mubr.f32.gmra.mrb[0].mxu0 %v1775
    %v1777 = vpop.f32.mrb[0].mxu0
    %v1778 = vadd.f32 %v1697, %v1777
    %v1779 = vpop.f32.mrb[0].mxu0
    %1780 = vdwg.mxu0
    %v1782 = vsel %vm1194, %v1216, 0
    %v1785 = vsel %vm1194, %v1218, 0
    %1787 = vmatprep.subr.mxu0 0.0
    %v1788 = vand.u32 %v96, 4294901760
    %1789 = vmatpush1.msra.mxu0 %v1788
    %1790 = vmatprep.subr.mxu0 0.0
    %v1791 = vand.u32 %v97, 4294901760
    %1792 = vmatpush1.msra.mxu0 %v1791
    %1793 = vmatprep.subr.mxu0 0.0
    %v1794 = vand.u32 %v98, 4294901760
    %1795 = vmatpush1.msra.mxu0 %v1794
    %1796 = vmatprep.subr.mxu0 0.0
    %v1797 = vand.u32 %v99, 4294901760
    %1798 = vmatpush1.msra.mxu0 %v1797
    %1799 = vmatprep.subr.mxu0 0.0
    %1800 = vmatpush1.msra.mxu0 0.0
    %1801 = vmatprep.subr.mxu0 0.0
    %1802 = vmatpush1.msra.mxu0 0.0
    %1803 = vmatprep.subr.mxu0 0.0
    %1804 = vmatpush1.msra.mxu0 0.0
    %1805 = vmatprep.subr.mxu0 0.0
    %1806 = vmatpush1.msra.mxu0 0.0
    %1807 = vmatprep.subr.mxu0 0.0
    %1808 = vmatpush1.msra.mxu0 0.0
    %1809 = vmatprep.subr.mxu0 0.0
    %1810 = vmatpush1.msra.mxu0 0.0
    %1811 = vmatprep.subr.mxu0 0.0
    %1812 = vmatpush1.msra.mxu0 0.0
    %1813 = vmatprep.subr.mxu0 0.0
    %1814 = vmatpush1.msra.mxu0 0.0
    %1815 = vmatprep.subr.mxu0 0.0
    %1816 = vmatpush1.msra.mxu0 0.0
    %1817 = vmatprep.subr.mxu0 0.0
    %1818 = vmatpush1.msra.mxu0 0.0
    %1819 = vmatprep.subr.mxu0 0.0
    %1820 = vmatpush1.msra.mxu0 0.0
    %1821 = vmatprep.subr.mxu0 0.0
    %1822 = vmatpush1.msra.mxu0 0.0
    %1823 = vmatprep.subr.mxu0 0.0
    %1824 = vmatpush1.msra.mxu0 0.0
    %1825 = vmatprep.subr.mxu0 0.0
    %1826 = vmatpush1.msra.mxu0 0.0
    %1827 = vmatprep.subr.mxu0 0.0
    %1828 = vmatpush1.msra.mxu0 0.0
    %1829 = vmatprep.subr.mxu0 0.0
    %1830 = vmatpush1.msra.mxu0 0.0
    %1831 = vmatprep.subr.mxu0 0.0
    %1832 = vmatpush1.msra.mxu0 0.0
    %1833 = vmatprep.subr.mxu0 0.0
    %1834 = vmatpush1.msra.mxu0 0.0
    %1835 = vmatprep.subr.mxu0 0.0
    %1836 = vmatpush1.msra.mxu0 0.0
    %1837 = vmatprep.subr.mxu0 0.0
    %1838 = vmatpush1.msra.mxu0 0.0
    %1839 = vmatprep.subr.mxu0 0.0
    %1840 = vmatpush1.msra.mxu0 0.0
    %1841 = vmatprep.subr.mxu0 0.0
    %1842 = vmatpush1.msra.mxu0 0.0
    %1843 = vmatprep.subr.mxu0 0.0
    %1844 = vmatpush1.msra.mxu0 0.0
    %1845 = vmatprep.subr.mxu0 0.0
    %1846 = vmatpush1.msra.mxu0 0.0
    %1847 = vmatprep.subr.mxu0 0.0
    %1848 = vmatpush1.msra.mxu0 0.0
    %1849 = vmatprep.subr.mxu0 0.0
    %1850 = vmatpush1.msra.mxu0 0.0
    %1851 = vmatprep.subr.mxu0 0.0
    %1852 = vmatpush1.msra.mxu0 0.0
    %1853 = vmatprep.subr.mxu0 0.0
    %1854 = vmatpush1.msra.mxu0 0.0
    %1855 = vmatprep.mubr.f32.mxu0 0.0
    %v1856 = vand.u32 %v1782, 4294901760
    %v1857 = vsub.f32 %v1782, %v1856
    %v1858 = vand.u32 %v1857, 4294901760
    %v1859 = vsub.f32 %v1857, %v1858
    %v1860 = vand.u32 %v1859, 4294901760
    %1861 = vmatmul.mubr.f32.gmra.mrb[0].mxu0 %v1860
    %v1862 = vpop.f32.mrb[0].mxu0
    %v1863 = vadd.f32 0.0, %v1862
    %v1864 = vpop.f32.mrb[0].mxu0
    %1865 = vmatprep.mubr.f32.mxu0 0.0
    %v1866 = vand.u32 %v1785, 4294901760
    %v1867 = vsub.f32 %v1785, %v1866
    %v1868 = vand.u32 %v1867, 4294901760
    %v1869 = vsub.f32 %v1867, %v1868
    %v1870 = vand.u32 %v1869, 4294901760
    %1871 = vmatmul.mubr.f32.gmra.mrb[0].mxu0 %v1870
    %v1872 = vpop.f32.mrb[0].mxu0
    %v1873 = vadd.f32 0.0, %v1872
    %v1874 = vpop.f32.mrb[0].mxu0
    %1875 = vdwg.mxu0
    %1876 = vmatprep.subr.mxu0 0.0
    %v1877 = vand.u32 %v96, 4294901760
    %v1878 = vsub.f32 %v96, %v1877
    %v1879 = vand.u32 %v1878, 4294901760
    %v1880 = vsub.f32 %v1878, %v1879
    %v1881 = vand.u32 %v1880, 4294901760
    %1882 = vmatpush1.msra.mxu0 %v1881
    %1883 = vmatprep.subr.mxu0 0.0
    %v1884 = vand.u32 %v97, 4294901760
    %v1885 = vsub.f32 %v97, %v1884
    %v1886 = vand.u32 %v1885, 4294901760
    %v1887 = vsub.f32 %v1885, %v1886
    %v1888 = vand.u32 %v1887, 4294901760
    %1889 = vmatpush1.msra.mxu0 %v1888
    %1890 = vmatprep.subr.mxu0 0.0
    %v1891 = vand.u32 %v98, 4294901760
    %v1892 = vsub.f32 %v98, %v1891
    %v1893 = vand.u32 %v1892, 4294901760
    %v1894 = vsub.f32 %v1892, %v1893
    %v1895 = vand.u32 %v1894, 4294901760
    %1896 = vmatpush1.msra.mxu0 %v1895
    %1897 = vmatprep.subr.mxu0 0.0
    %v1898 = vand.u32 %v99, 4294901760
    %v1899 = vsub.f32 %v99, %v1898
    %v1900 = vand.u32 %v1899, 4294901760
    %v1901 = vsub.f32 %v1899, %v1900
    %v1902 = vand.u32 %v1901, 4294901760
    %1903 = vmatpush1.msra.mxu0 %v1902
    %1904 = vmatprep.subr.mxu0 0.0
    %1905 = vmatpush1.msra.mxu0 0.0
    %1906 = vmatprep.subr.mxu0 0.0
    %1907 = vmatpush1.msra.mxu0 0.0
    %1908 = vmatprep.subr.mxu0 0.0
    %1909 = vmatpush1.msra.mxu0 0.0
    %1910 = vmatprep.subr.mxu0 0.0
    %1911 = vmatpush1.msra.mxu0 0.0
    %1912 = vmatprep.subr.mxu0 0.0
    %1913 = vmatpush1.msra.mxu0 0.0
    %1914 = vmatprep.subr.mxu0 0.0
    %1915 = vmatpush1.msra.mxu0 0.0
    %1916 = vmatprep.subr.mxu0 0.0
    %1917 = vmatpush1.msra.mxu0 0.0
    %1918 = vmatprep.subr.mxu0 0.0
    %1919 = vmatpush1.msra.mxu0 0.0
    %1920 = vmatprep.subr.mxu0 0.0
    %1921 = vmatpush1.msra.mxu0 0.0
    %1922 = vmatprep.subr.mxu0 0.0
    %1923 = vmatpush1.msra.mxu0 0.0
    %1924 = vmatprep.subr.mxu0 0.0
    %1925 = vmatpush1.msra.mxu0 0.0
    %1926 = vmatprep.subr.mxu0 0.0
    %1927 = vmatpush1.msra.mxu0 0.0
    %1928 = vmatprep.subr.mxu0 0.0
    %1929 = vmatpush1.msra.mxu0 0.0
    %1930 = vmatprep.subr.mxu0 0.0
    %1931 = vmatpush1.msra.mxu0 0.0
    %1932 = vmatprep.subr.mxu0 0.0
    %1933 = vmatpush1.msra.mxu0 0.0
    %1934 = vmatprep.subr.mxu0 0.0
    %1935 = vmatpush1.msra.mxu0 0.0
    %1936 = vmatprep.subr.mxu0 0.0
    %1937 = vmatpush1.msra.mxu0 0.0
    %1938 = vmatprep.subr.mxu0 0.0
    %1939 = vmatpush1.msra.mxu0 0.0
    %1940 = vmatprep.subr.mxu0 0.0
    %1941 = vmatpush1.msra.mxu0 0.0
    %1942 = vmatprep.subr.mxu0 0.0
    %1943 = vmatpush1.msra.mxu0 0.0
    %1944 = vmatprep.subr.mxu0 0.0
    %1945 = vmatpush1.msra.mxu0 0.0
    %1946 = vmatprep.subr.mxu0 0.0
    %1947 = vmatpush1.msra.mxu0 0.0
    %1948 = vmatprep.subr.mxu0 0.0
    %1949 = vmatpush1.msra.mxu0 0.0
    %1950 = vmatprep.subr.mxu0 0.0
    %1951 = vmatpush1.msra.mxu0 0.0
    %1952 = vmatprep.subr.mxu0 0.0
    %1953 = vmatpush1.msra.mxu0 0.0
    %1954 = vmatprep.subr.mxu0 0.0
    %1955 = vmatpush1.msra.mxu0 0.0
    %1956 = vmatprep.subr.mxu0 0.0
    %1957 = vmatpush1.msra.mxu0 0.0
    %1958 = vmatprep.subr.mxu0 0.0
    %1959 = vmatpush1.msra.mxu0 0.0
    %1960 = vmatprep.mubr.f32.mxu0 0.0
    %v1961 = vand.u32 %v1782, 4294901760
    %1962 = vmatmul.mubr.f32.gmra.mrb[0].mxu0 %v1961
    %v1963 = vpop.f32.mrb[0].mxu0
    %v1964 = vadd.f32 %v1863, %v1963
    %v1965 = vpop.f32.mrb[0].mxu0
    %1966 = vmatprep.mubr.f32.mxu0 0.0
    %v1967 = vand.u32 %v1785, 4294901760
    %1968 = vmatmul.mubr.f32.gmra.mrb[0].mxu0 %v1967
    %v1969 = vpop.f32.mrb[0].mxu0
    %v1970 = vadd.f32 %v1873, %v1969
    %v1971 = vpop.f32.mrb[0].mxu0
    %1972 = vdwg.mxu0
    %1973 = vmatprep.subr.mxu0 0.0
    %v1974 = vand.u32 %v96, 4294901760
    %v1975 = vsub.f32 %v96, %v1974
    %1976 = vmatpush1.msra.mxu0 %v1975
    %1977 = vmatprep.subr.mxu0 0.0
    %v1978 = vand.u32 %v97, 4294901760
    %v1979 = vsub.f32 %v97, %v1978
    %1980 = vmatpush1.msra.mxu0 %v1979
    %1981 = vmatprep.subr.mxu0 0.0
    %v1982 = vand.u32 %v98, 4294901760
    %v1983 = vsub.f32 %v98, %v1982
    %1984 = vmatpush1.msra.mxu0 %v1983
    %1985 = vmatprep.subr.mxu0 0.0
    %v1986 = vand.u32 %v99, 4294901760
    %v1987 = vsub.f32 %v99, %v1986
    %1988 = vmatpush1.msra.mxu0 %v1987
    %1989 = vmatprep.subr.mxu0 0.0
    %1990 = vmatpush1.msra.mxu0 0.0
    %1991 = vmatprep.subr.mxu0 0.0
    %1992 = vmatpush1.msra.mxu0 0.0
    %1993 = vmatprep.subr.mxu0 0.0
    %1994 = vmatpush1.msra.mxu0 0.0
    %1995 = vmatprep.subr.mxu0 0.0
    %1996 = vmatpush1.msra.mxu0 0.0
    %1997 = vmatprep.subr.mxu0 0.0
    %1998 = vmatpush1.msra.mxu0 0.0
    %1999 = vmatprep.subr.mxu0 0.0
    %2000 = vmatpush1.msra.mxu0 0.0
    %2001 = vmatprep.subr.mxu0 0.0
    %2002 = vmatpush1.msra.mxu0 0.0
    %2003 = vmatprep.subr.mxu0 0.0
    %2004 = vmatpush1.msra.mxu0 0.0
    %2005 = vmatprep.subr.mxu0 0.0
    %2006 = vmatpush1.msra.mxu0 0.0
    %2007 = vmatprep.subr.mxu0 0.0
    %2008 = vmatpush1.msra.mxu0 0.0
    %2009 = vmatprep.subr.mxu0 0.0
    %2010 = vmatpush1.msra.mxu0 0.0
    %2011 = vmatprep.subr.mxu0 0.0
    %2012 = vmatpush1.msra.mxu0 0.0
    %2013 = vmatprep.subr.mxu0 0.0
    %2014 = vmatpush1.msra.mxu0 0.0
    %2015 = vmatprep.subr.mxu0 0.0
    %2016 = vmatpush1.msra.mxu0 0.0
    %2017 = vmatprep.subr.mxu0 0.0
    %2018 = vmatpush1.msra.mxu0 0.0
    %2019 = vmatprep.subr.mxu0 0.0
    %2020 = vmatpush1.msra.mxu0 0.0
    %2021 = vmatprep.subr.mxu0 0.0
    %2022 = vmatpush1.msra.mxu0 0.0
    %2023 = vmatprep.subr.mxu0 0.0
    %2024 = vmatpush1.msra.mxu0 0.0
    %2025 = vmatprep.subr.mxu0 0.0
    %2026 = vmatpush1.msra.mxu0 0.0
    %2027 = vmatprep.subr.mxu0 0.0
    %2028 = vmatpush1.msra.mxu0 0.0
    %2029 = vmatprep.subr.mxu0 0.0
    %2030 = vmatpush1.msra.mxu0 0.0
    %2031 = vmatprep.subr.mxu0 0.0
    %2032 = vmatpush1.msra.mxu0 0.0
    %2033 = vmatprep.subr.mxu0 0.0
    %2034 = vmatpush1.msra.mxu0 0.0
    %2035 = vmatprep.subr.mxu0 0.0
    %2036 = vmatpush1.msra.mxu0 0.0
    %2037 = vmatprep.subr.mxu0 0.0
    %2038 = vmatpush1.msra.mxu0 0.0
    %2039 = vmatprep.subr.mxu0 0.0
    %2040 = vmatpush1.msra.mxu0 0.0
    %2041 = vmatprep.subr.mxu0 0.0
    %2042 = vmatpush1.msra.mxu0 0.0
    %2043 = vmatprep.subr.mxu0 0.0
    %2044 = vmatpush1.msra.mxu0 0.0
    %2045 = vmatprep.mubr.f32.mxu0 0.0
    %v2046 = vand.u32 %v1782, 4294901760
    %v2047 = vsub.f32 %v1782, %v2046
    %2048 = vmatmul.mubr.f32.gmra.mrb[0].mxu0 %v2047
    %v2049 = vpop.f32.mrb[0].mxu0
    %v2050 = vadd.f32 %v1964, %v2049
    %v2051 = vpop.f32.mrb[0].mxu0
    %2052 = vmatprep.mubr.f32.mxu0 0.0
    %v2053 = vand.u32 %v1785, 4294901760
    %v2054 = vsub.f32 %v1785, %v2053
    %2055 = vmatmul.mubr.f32.gmra.mrb[0].mxu0 %v2054
    %v2056 = vpop.f32.mrb[0].mxu0
    %v2057 = vadd.f32 %v1970, %v2056
    %v2058 = vpop.f32.mrb[0].mxu0
    %2059 = vdwg.mxu0
    %2060 = vmatprep.subr.mxu0 0.0
    %v2061 = vand.u32 %v96, 4294901760
    %2062 = vmatpush1.msra.mxu0 %v2061
    %2063 = vmatprep.subr.mxu0 0.0
    %v2064 = vand.u32 %v97, 4294901760
    %2065 = vmatpush1.msra.mxu0 %v2064
    %2066 = vmatprep.subr.mxu0 0.0
    %v2067 = vand.u32 %v98, 4294901760
    %2068 = vmatpush1.msra.mxu0 %v2067
    %2069 = vmatprep.subr.mxu0 0.0
    %v2070 = vand.u32 %v99, 4294901760
    %2071 = vmatpush1.msra.mxu0 %v2070
    %2072 = vmatprep.subr.mxu0 0.0
    %2073 = vmatpush1.msra.mxu0 0.0
    %2074 = vmatprep.subr.mxu0 0.0
    %2075 = vmatpush1.msra.mxu0 0.0
    %2076 = vmatprep.subr.mxu0 0.0
    %2077 = vmatpush1.msra.mxu0 0.0
    %2078 = vmatprep.subr.mxu0 0.0
    %2079 = vmatpush1.msra.mxu0 0.0
    %2080 = vmatprep.subr.mxu0 0.0
    %2081 = vmatpush1.msra.mxu0 0.0
    %2082 = vmatprep.subr.mxu0 0.0
    %2083 = vmatpush1.msra.mxu0 0.0
    %2084 = vmatprep.subr.mxu0 0.0
    %2085 = vmatpush1.msra.mxu0 0.0
    %2086 = vmatprep.subr.mxu0 0.0
    %2087 = vmatpush1.msra.mxu0 0.0
    %2088 = vmatprep.subr.mxu0 0.0
    %2089 = vmatpush1.msra.mxu0 0.0
    %2090 = vmatprep.subr.mxu0 0.0
    %2091 = vmatpush1.msra.mxu0 0.0
    %2092 = vmatprep.subr.mxu0 0.0
    %2093 = vmatpush1.msra.mxu0 0.0
    %2094 = vmatprep.subr.mxu0 0.0
    %2095 = vmatpush1.msra.mxu0 0.0
    %2096 = vmatprep.subr.mxu0 0.0
    %2097 = vmatpush1.msra.mxu0 0.0
    %2098 = vmatprep.subr.mxu0 0.0
    %2099 = vmatpush1.msra.mxu0 0.0
    %2100 = vmatprep.subr.mxu0 0.0
    %2101 = vmatpush1.msra.mxu0 0.0
    %2102 = vmatprep.subr.mxu0 0.0
    %2103 = vmatpush1.msra.mxu0 0.0
    %2104 = vmatprep.subr.mxu0 0.0
    %2105 = vmatpush1.msra.mxu0 0.0
    %2106 = vmatprep.subr.mxu0 0.0
    %2107 = vmatpush1.msra.mxu0 0.0
    %2108 = vmatprep.subr.mxu0 0.0
    %2109 = vmatpush1.msra.mxu0 0.0
    %2110 = vmatprep.subr.mxu0 0.0
    %2111 = vmatpush1.msra.mxu0 0.0
    %2112 = vmatprep.subr.mxu0 0.0
    %2113 = vmatpush1.msra.mxu0 0.0
    %2114 = vmatprep.subr.mxu0 0.0
    %2115 = vmatpush1.msra.mxu0 0.0
    %2116 = vmatprep.subr.mxu0 0.0
    %2117 = vmatpush1.msra.mxu0 0.0
    %2118 = vmatprep.subr.mxu0 0.0
    %2119 = vmatpush1.msra.mxu0 0.0
    %2120 = vmatprep.subr.mxu0 0.0
    %2121 = vmatpush1.msra.mxu0 0.0
    %2122 = vmatprep.subr.mxu0 0.0
    %2123 = vmatpush1.msra.mxu0 0.0
    %2124 = vmatprep.subr.mxu0 0.0
    %2125 = vmatpush1.msra.mxu0 0.0
    %2126 = vmatprep.subr.mxu0 0.0
    %2127 = vmatpush1.msra.mxu0 0.0
    %2128 = vmatprep.mubr.f32.mxu0 0.0
    %v2129 = vand.u32 %v1782, 4294901760
    %v2130 = vsub.f32 %v1782, %v2129
    %v2131 = vand.u32 %v2130, 4294901760
    %2132 = vmatmul.mubr.f32.gmra.mrb[0].mxu0 %v2131
    %v2133 = vpop.f32.mrb[0].mxu0
    %v2134 = vadd.f32 %v2050, %v2133
    %v2135 = vpop.f32.mrb[0].mxu0
    %2136 = vmatprep.mubr.f32.mxu0 0.0
    %v2137 = vand.u32 %v1785, 4294901760
    %v2138 = vsub.f32 %v1785, %v2137
    %v2139 = vand.u32 %v2138, 4294901760
    %2140 = vmatmul.mubr.f32.gmra.mrb[0].mxu0 %v2139
    %v2141 = vpop.f32.mrb[0].mxu0
    %v2142 = vadd.f32 %v2057, %v2141
    %v2143 = vpop.f32.mrb[0].mxu0
    %2144 = vdwg.mxu0
    %2145 = vmatprep.subr.mxu0 0.0
    %v2146 = vand.u32 %v96, 4294901760
    %v2147 = vsub.f32 %v96, %v2146
    %v2148 = vand.u32 %v2147, 4294901760
    %2149 = vmatpush1.msra.mxu0 %v2148
    %2150 = vmatprep.subr.mxu0 0.0
    %v2151 = vand.u32 %v97, 4294901760
    %v2152 = vsub.f32 %v97, %v2151
    %v2153 = vand.u32 %v2152, 4294901760
    %2154 = vmatpush1.msra.mxu0 %v2153
    %2155 = vmatprep.subr.mxu0 0.0
    %v2156 = vand.u32 %v98, 4294901760
    %v2157 = vsub.f32 %v98, %v2156
    %v2158 = vand.u32 %v2157, 4294901760
    %2159 = vmatpush1.msra.mxu0 %v2158
    %2160 = vmatprep.subr.mxu0 0.0
    %v2161 = vand.u32 %v99, 4294901760
    %v2162 = vsub.f32 %v99, %v2161
    %v2163 = vand.u32 %v2162, 4294901760
    %2164 = vmatpush1.msra.mxu0 %v2163
    %2165 = vmatprep.subr.mxu0 0.0
    %2166 = vmatpush1.msra.mxu0 0.0
    %2167 = vmatprep.subr.mxu0 0.0
    %2168 = vmatpush1.msra.mxu0 0.0
    %2169 = vmatprep.subr.mxu0 0.0
    %2170 = vmatpush1.msra.mxu0 0.0
    %2171 = vmatprep.subr.mxu0 0.0
    %2172 = vmatpush1.msra.mxu0 0.0
    %2173 = vmatprep.subr.mxu0 0.0
    %2174 = vmatpush1.msra.mxu0 0.0
    %2175 = vmatprep.subr.mxu0 0.0
    %2176 = vmatpush1.msra.mxu0 0.0
    %2177 = vmatprep.subr.mxu0 0.0
    %2178 = vmatpush1.msra.mxu0 0.0
    %2179 = vmatprep.subr.mxu0 0.0
    %2180 = vmatpush1.msra.mxu0 0.0
    %2181 = vmatprep.subr.mxu0 0.0
    %2182 = vmatpush1.msra.mxu0 0.0
    %2183 = vmatprep.subr.mxu0 0.0
    %2184 = vmatpush1.msra.mxu0 0.0
    %2185 = vmatprep.subr.mxu0 0.0
    %2186 = vmatpush1.msra.mxu0 0.0
    %2187 = vmatprep.subr.mxu0 0.0
    %2188 = vmatpush1.msra.mxu0 0.0
    %2189 = vmatprep.subr.mxu0 0.0
    %2190 = vmatpush1.msra.mxu0 0.0
    %2191 = vmatprep.subr.mxu0 0.0
    %2192 = vmatpush1.msra.mxu0 0.0
    %2193 = vmatprep.subr.mxu0 0.0
    %2194 = vmatpush1.msra.mxu0 0.0
    %2195 = vmatprep.subr.mxu0 0.0
    %2196 = vmatpush1.msra.mxu0 0.0
    %2197 = vmatprep.subr.mxu0 0.0
    %2198 = vmatpush1.msra.mxu0 0.0
    %2199 = vmatprep.subr.mxu0 0.0
    %2200 = vmatpush1.msra.mxu0 0.0
    %2201 = vmatprep.subr.mxu0 0.0
    %2202 = vmatpush1.msra.mxu0 0.0
    %2203 = vmatprep.subr.mxu0 0.0
    %2204 = vmatpush1.msra.mxu0 0.0
    %2205 = vmatprep.subr.mxu0 0.0
    %2206 = vmatpush1.msra.mxu0 0.0
    %2207 = vmatprep.subr.mxu0 0.0
    %2208 = vmatpush1.msra.mxu0 0.0
    %2209 = vmatprep.subr.mxu0 0.0
    %2210 = vmatpush1.msra.mxu0 0.0
    %2211 = vmatprep.subr.mxu0 0.0
    %2212 = vmatpush1.msra.mxu0 0.0
    %2213 = vmatprep.subr.mxu0 0.0
    %2214 = vmatpush1.msra.mxu0 0.0
    %2215 = vmatprep.subr.mxu0 0.0
    %2216 = vmatpush1.msra.mxu0 0.0
    %2217 = vmatprep.subr.mxu0 0.0
    %2218 = vmatpush1.msra.mxu0 0.0
    %2219 = vmatprep.subr.mxu0 0.0
    %2220 = vmatpush1.msra.mxu0 0.0
    %2221 = vmatprep.mubr.f32.mxu0 0.0
    %v2222 = vand.u32 %v1782, 4294901760
    %2223 = vmatmul.mubr.f32.gmra.mrb[0].mxu0 %v2222
    %v2224 = vpop.f32.mrb[0].mxu0
    %v2225 = vadd.f32 %v2134, %v2224
    %v2226 = vpop.f32.mrb[0].mxu0
    %2227 = vmatprep.mubr.f32.mxu0 0.0
    %v2228 = vand.u32 %v1785, 4294901760
    %2229 = vmatmul.mubr.f32.gmra.mrb[0].mxu0 %v2228
    %v2230 = vpop.f32.mrb[0].mxu0
    %v2231 = vadd.f32 %v2142, %v2230
    %v2232 = vpop.f32.mrb[0].mxu0
    %2233 = vdwg.mxu0
    %2234 = vmatprep.subr.mxu0 0.0
    %v2235 = vand.u32 %v96, 4294901760
    %2236 = vmatpush1.msra.mxu0 %v2235
    %2237 = vmatprep.subr.mxu0 0.0
    %v2238 = vand.u32 %v97, 4294901760
    %2239 = vmatpush1.msra.mxu0 %v2238
    %2240 = vmatprep.subr.mxu0 0.0
    %v2241 = vand.u32 %v98, 4294901760
    %2242 = vmatpush1.msra.mxu0 %v2241
    %2243 = vmatprep.subr.mxu0 0.0
    %v2244 = vand.u32 %v99, 4294901760
    %2245 = vmatpush1.msra.mxu0 %v2244
    %2246 = vmatprep.subr.mxu0 0.0
    %2247 = vmatpush1.msra.mxu0 0.0
    %2248 = vmatprep.subr.mxu0 0.0
    %2249 = vmatpush1.msra.mxu0 0.0
    %2250 = vmatprep.subr.mxu0 0.0
    %2251 = vmatpush1.msra.mxu0 0.0
    %2252 = vmatprep.subr.mxu0 0.0
    %2253 = vmatpush1.msra.mxu0 0.0
    %2254 = vmatprep.subr.mxu0 0.0
    %2255 = vmatpush1.msra.mxu0 0.0
    %2256 = vmatprep.subr.mxu0 0.0
    %2257 = vmatpush1.msra.mxu0 0.0
    %2258 = vmatprep.subr.mxu0 0.0
    %2259 = vmatpush1.msra.mxu0 0.0
    %2260 = vmatprep.subr.mxu0 0.0
    %2261 = vmatpush1.msra.mxu0 0.0
    %2262 = vmatprep.subr.mxu0 0.0
    %2263 = vmatpush1.msra.mxu0 0.0
    %2264 = vmatprep.subr.mxu0 0.0
    %2265 = vmatpush1.msra.mxu0 0.0
    %2266 = vmatprep.subr.mxu0 0.0
    %2267 = vmatpush1.msra.mxu0 0.0
    %2268 = vmatprep.subr.mxu0 0.0
    %2269 = vmatpush1.msra.mxu0 0.0
    %2270 = vmatprep.subr.mxu0 0.0
    %2271 = vmatpush1.msra.mxu0 0.0
    %2272 = vmatprep.subr.mxu0 0.0
    %2273 = vmatpush1.msra.mxu0 0.0
    %2274 = vmatprep.subr.mxu0 0.0
    %2275 = vmatpush1.msra.mxu0 0.0
    %2276 = vmatprep.subr.mxu0 0.0
    %2277 = vmatpush1.msra.mxu0 0.0
    %2278 = vmatprep.subr.mxu0 0.0
    %2279 = vmatpush1.msra.mxu0 0.0
    %2280 = vmatprep.subr.mxu0 0.0
    %2281 = vmatpush1.msra.mxu0 0.0
    %2282 = vmatprep.subr.mxu0 0.0
    %2283 = vmatpush1.msra.mxu0 0.0
    %2284 = vmatprep.subr.mxu0 0.0
    %2285 = vmatpush1.msra.mxu0 0.0
    %2286 = vmatprep.subr.mxu0 0.0
    %2287 = vmatpush1.msra.mxu0 0.0
    %2288 = vmatprep.subr.mxu0 0.0
    %2289 = vmatpush1.msra.mxu0 0.0
    %2290 = vmatprep.subr.mxu0 0.0
    %2291 = vmatpush1.msra.mxu0 0.0
    %2292 = vmatprep.subr.mxu0 0.0
    %2293 = vmatpush1.msra.mxu0 0.0
    %2294 = vmatprep.subr.mxu0 0.0
    %2295 = vmatpush1.msra.mxu0 0.0
    %2296 = vmatprep.subr.mxu0 0.0
    %2297 = vmatpush1.msra.mxu0 0.0
    %2298 = vmatprep.subr.mxu0 0.0
    %2299 = vmatpush1.msra.mxu0 0.0
    %2300 = vmatprep.subr.mxu0 0.0
    %2301 = vmatpush1.msra.mxu0 0.0
    %2302 = vmatprep.mubr.f32.mxu0 0.0
    %v2303 = vand.u32 %v1782, 4294901760
    %2304 = vmatmul.mubr.f32.gmra.mrb[0].mxu0 %v2303
    %v2305 = vpop.f32.mrb[0].mxu0
    %v2306 = vadd.f32 %v2225, %v2305
    %v2307 = vpop.f32.mrb[0].mxu0
    %2308 = vmatprep.mubr.f32.mxu0 0.0
    %v2309 = vand.u32 %v1785, 4294901760
    %2310 = vmatmul.mubr.f32.gmra.mrb[0].mxu0 %v2309
    %v2311 = vpop.f32.mrb[0].mxu0
    %v2312 = vadd.f32 %v2231, %v2311
    %v2313 = vpop.f32.mrb[0].mxu0
    %2314 = vdwg.mxu0
    %v2315 = vmul.f32 %v1772, %v1243
    %v2316 = vmul.f32 %v1778, %v1244
    %v2317 = vmul.f32 %v2306, %v1245
    %v2318 = vmul.f32 %v2312, %v1246
    %v2320 = vlaneseq
    %v2321 = vshrl.u32 %v2320, 7
    %v2322 = vsub.s32 0, %v2321
    %v2323 = vrot.slane %v100, %v2322
    %v2325 = vadd.f32 %v2315, %v2323
    %v2326 = vadd.f32 %v2316, %v2323
    %v2327 = vadd.f32 %v2317, %v2323
    %v2328 = vadd.f32 %v2318, %v2323
    %vm2329 = vcmask 654336
    %2330 = vst.msk [vmem:[#allocation10] sm:$0xff] %vm2329, %v2325
    %2331 = vst.msk [vmem:[#allocation10 + $0x8] sm:$0xff] %vm2329, %v2326
    %2332 = vst.msk [vmem:[#allocation10 + $0x10] sm:$0xff] %vm2329, %v2327
    %2333 = vst.msk [vmem:[#allocation10 + $0x18] sm:$0xff] %vm2329, %v2328
    // Predicated region
    $region38: #{tpu_custom_call.1} parent=1 // pred_check
      _
    $region39: #{tpu_custom_call.1} parent=1 // pred_check_branch
      %2335 = sbr.rel (0) target = $region41
    $region40: #{tpu_custom_call.1} parent=1 // pred_region
      %s2337 = ssub.s32 512, 512
      %2338 = vsyncadd [#allocation4], %s2337
      %s2339 = sshll.u32 [#allocation10], 4
      %s2340 = int_to_ptr.vmem [resolvable:$true] %s2339
      %2345 = dma.vmem_to_hbm [thread:$0]  %s2340, 512, %s5, [#allocation4], 128, 128, 8
    $region41: #{tpu_custom_call.1} parent=1 // pred_fallthru
      _
    // Predicated region
    $region42: #{tpu_custom_call.1} parent=1 // pred_check
      _
    $region43: #{tpu_custom_call.1} parent=1 // pred_check_branch
      %2347 = sbr.rel (0) target = $region45
    $region44: #{tpu_custom_call.1} parent=1 // pred_region
      %2348 = dma.done [#allocation4], 512
    $region45: #{tpu_custom_call.1} parent=1 // pred_fallthru
      _
    %2349 = vsyncpa [#allocation3], 1
    %2350 = vsyncpa [#allocation6], 1
    %2351 = vsyncpa [#allocation9], 1
    %2352 = vsyncpa [#allocation4], 1

</llo_original>
